<compile_context>
chip_gen: v7x
topology: tpu7x:2x2x1
jax: 0.10.0
libtpu: 0.0.40
codegen_flags: <defaults>
</compile_context>

<pallas_src>
import functools

import jax
import jax.numpy as jnp
from jax import lax
from jax.experimental import pallas as pl
from jax.experimental.pallas import tpu as pltpu

_BIG = 1e30  # finite "masked out" distance (avoids inf - inf -> NaN)


def _triplet_kernel(lab_sref, e_ref, sqc_ref, sqr_ref, labc_ref, labr_ref,
                    loss_ref, cnt_ref, *, margin: float, anchor_tile: int,
                    chunk: int):
    N, D = e_ref.shape
    TA = anchor_tile
    CH = chunk
    n_chunks = TA // CH

    t = pl.program_id(0)
    base = pl.multiple_of(t * TA, TA)          # first anchor handled by this tile

    m = jnp.float32(margin)
    big = jnp.float32(_BIG)
    col_iota = lax.broadcasted_iota(jnp.int32, (1, CH), 1)

    def chunk_body(ci, carry):
        loss_acc, cnt_acc = carry                        # (1,1) f32 / (1,1) i32
        off = pl.multiple_of(base + ci * CH, CH)         # first anchor of this chunk

        E = e_ref[...]                                   # (N, D), input dtype
        Ec = e_ref[pl.ds(off, CH), :]                    # (CH, D) chunk anchors
        sq_all_col = sqc_ref[...]                        # (N, 1) f32
        sq_all_row = sqr_ref[...]                        # (1, N) f32
        sq_c = sqc_ref[pl.ds(off, CH), :]                # (CH, 1) f32
        lab_col = labc_ref[...]                          # (N, 1) i32
        lab_row = labr_ref[...]                          # (1, N) i32

        # Row-oriented distances for the chunk's anchors: d_r[c, k] = dist[a_c, k].
        g_r = lax.dot_general(Ec, E, (((1,), (1,)), ((), ())),
                              preferred_element_type=jnp.float32)    # (CH, N)
        d_r = -2.0 * g_r + sq_c + sq_all_row                         # (CH, N)

        # Column-oriented Gram for the chunk: g_c[j, c] = <e_j, e_{a_c}>.
        g_c = lax.dot_general(E, Ec, (((1,), (1,)), ((), ())),
                              preferred_element_type=jnp.float32)    # (N, CH)

        for c in range(CH):                              # static -> fully unrolled
            lab_a = lab_sref[off + c]                    # SMEM scalar read
            # Negatives row, pre-masked: same-label k pushed to +BIG so value>0 fails.
            d_row = jnp.where(lab_row == lab_a, big, d_r[c:c + 1, :])       # (1, N)
            # Positives column with the margin folded in: dist[j, a_c] + margin.
            g_col = jnp.sum(jnp.where(col_iota == c, g_c, 0.0),
                            axis=1, keepdims=True)                           # (N, 1)
            d_col = -2.0 * g_col + sq_all_col + (sq_c[c:c + 1, 0:1] + m)     # (N, 1)

            value = d_col - d_row                        # (N, N) over (j, k)
            in_range = (value > 0.0) & (value < m)
            loss_j = jnp.sum(jnp.where(in_range, value, 0.0),
                             axis=1, keepdims=True)                          # (N, 1)
            cnt_j = jnp.sum(in_range.astype(jnp.int32),
                            axis=1, keepdims=True)                           # (N, 1)
            same_j = lab_col == lab_a                    # positives mask over j
            loss_acc = loss_acc + jnp.sum(jnp.where(same_j, loss_j, 0.0),
                                          keepdims=True)
            cnt_acc = cnt_acc + jnp.sum(jnp.where(same_j, cnt_j, 0),
                                        keepdims=True)
        return loss_acc, cnt_acc

    init = (jnp.zeros((1, 1), jnp.float32), jnp.zeros((1, 1), jnp.int32))
    loss_t, cnt_t = lax.fori_loop(0, n_chunks, chunk_body, init)
    loss_ref[...] = loss_t.reshape(1, 1, 1)
    cnt_ref[...] = cnt_t.reshape(1, 1, 1)


def _pick_anchor_tile(n, max_tile=128):
    for cand in range(min(max_tile, n), 0, -1):
        if n % cand == 0:
            return cand
    return 1


def _pick_chunk(ta):
    for cand in (8, 4, 2, 1):
        if ta % cand == 0:
            return cand
    return 1


def _vmem_limit_bytes(n, d, itemsize):
    est = (2 * n * d * itemsize            # embeddings block, double-buffered
           + 2 * 2 * n * 512               # (N,1) f32/i32 inputs, lane-padded, x2 bufs
           + 2 * 2 * 8 * n * 4             # (1,N) inputs, sublane-padded, x2 bufs
           + (4 << 20))                    # chunk temporaries + compiler slack
    # Cap at 48 MiB so the request stays safe against v7x's 64 MiB physical VMEM.
    return int(min(max(est, 16 * 1024 * 1024), 48 * 1024 * 1024))


def triplet_loss(embeddings, labels, margin, max_anchor_tile=128):
    """embeddings: (N, D), labels: (N,) int. Returns (loss, count) as JAX arrays."""
    n, d = embeddings.shape
    ta = _pick_anchor_tile(n, max_anchor_tile)
    ch = _pick_chunk(ta)
    num_tiles = n // ta
    # NOTE: on v7x an even num_tiles splits the "parallel" axis across both
    # TensorCores; with max_anchor_tile=128 that holds for N >= 256.

    labels_i32 = labels.astype(jnp.int32).reshape(n)
    lab_col = labels_i32.reshape(n, 1)
    lab_row = labels_i32.reshape(1, n)
    sq = jnp.sum(jnp.square(embeddings.astype(jnp.float32)), axis=1)  # hoisted norms
    sq_col = sq.reshape(n, 1)
    sq_row = sq.reshape(1, n)

    kernel = functools.partial(_triplet_kernel, margin=float(margin),
                               anchor_tile=ta, chunk=ch)
    grid_spec = pltpu.PrefetchScalarGridSpec(
        num_scalar_prefetch=1,                 # labels -> SMEM
        grid=(num_tiles,),                     # tiles of `ta` anchors
        in_specs=[
            pl.BlockSpec((n, d), lambda t, lab: (0, 0)),   # embeddings, resident
            pl.BlockSpec((n, 1), lambda t, lab: (0, 0)),   # ||e||^2 as column
            pl.BlockSpec((1, n), lambda t, lab: (0, 0)),   # ||e||^2 as row
            pl.BlockSpec((n, 1), lambda t, lab: (0, 0)),   # labels as column
            pl.BlockSpec((1, n), lambda t, lab: (0, 0)),   # labels as row
        ],
        out_specs=(
            pl.BlockSpec((1, 1, 1), lambda t, lab: (t, 0, 0)),  # per-tile loss partial
            pl.BlockSpec((1, 1, 1), lambda t, lab: (t, 0, 0)),  # per-tile count partial
        ),
    )
    loss_p, cnt_p = pl.pallas_call(
        kernel,
        out_shape=(jax.ShapeDtypeStruct((num_tiles, 1, 1), jnp.float32),
                   jax.ShapeDtypeStruct((num_tiles, 1, 1), jnp.int32)),
        grid_spec=grid_spec,
        compiler_params=pltpu.CompilerParams(
            dimension_semantics=("parallel",),           # anchor tiles across TCs
            vmem_limit_bytes=_vmem_limit_bytes(n, d, embeddings.dtype.itemsize)),
    )(labels_i32, embeddings, sq_col, sq_row, lab_col, lab_row)

    loss = jnp.sum(loss_p)
    count = jnp.sum(cnt_p)      # exact int32 count (jit-friendly; no host sync here)
    return loss, count


if __name__ == "__main__":
    key = jax.random.PRNGKey(0)
    k1, k2 = jax.random.split(key)
    N, D = 16, 32
    margin = 1.0
    embeddings = jax.random.normal(k1, (N, D), dtype=jnp.float32) * 0.3
    labels = jax.random.randint(k2, (N,), 0, 4, dtype=jnp.int32)

    loss, count = triplet_loss(embeddings, labels, margin)
    loss, count = jax.block_until_ready((loss, count))

    # Pure-JAX reference (mirrors the PyTorch per-label loop as a dense reduction).
    sq = jnp.sum(embeddings ** 2, axis=1)
    dref = -2.0 * embeddings @ embeddings.T + sq[None, :] + sq[:, None]
    same = labels[:, None] == labels[None, :]
    l3 = dref[:, :, None] - dref[:, None, :] + margin
    valid = same[:, :, None] & (~same)[:, None, :] & (l3 > 0) & (l3 < margin)
    ref_loss = float(jnp.sum(jnp.where(valid, l3, 0.0)))
    ref_cnt = int(jnp.sum(valid))

    assert abs(float(loss) - ref_loss) <= 1e-3 + 1e-3 * abs(ref_loss), (float(loss), ref_loss)
    assert int(count) == ref_cnt, (int(count), ref_cnt)
    print("KERNEL_OK")
</pallas_src>

<mosaic_0001>
module attributes {stable_mosaic.version = 11 : i64} {
  func.func @_triplet_kernel(%arg0: i32, %arg1: memref<16xi32, #tpu.memory_space<smem>>, %arg2: memref<16x32xf32, #tpu.memory_space<vmem>>, %arg3: memref<16x1xf32, #tpu.memory_space<vmem>>, %arg4: memref<1x16xf32, #tpu.memory_space<vmem>>, %arg5: memref<16x1xi32, #tpu.memory_space<vmem>>, %arg6: memref<1x16xi32, #tpu.memory_space<vmem>>, %arg7: memref<1x1x1xf32, #tpu.memory_space<vmem>>, %arg8: memref<1x1x1xi32, #tpu.memory_space<vmem>>) attributes {dimension_semantics = [#tpu.dimension_semantics<parallel>], iteration_bounds = array<i64: 1>, scalar_prefetch = 1 : i64, scratch_operands = 0 : i64, tpu.core_type = #tpu.core_type<tc>, window_params = [{pipeline_mode = #tpu.pipeline_mode<synchronous>, transform_indices = @transform_0, window_bounds = array<i64: 16, 32>}, {pipeline_mode = #tpu.pipeline_mode<synchronous>, transform_indices = @transform_1, window_bounds = array<i64: 16, 1>}, {pipeline_mode = #tpu.pipeline_mode<synchronous>, transform_indices = @transform_2, window_bounds = array<i64: 1, 16>}, {pipeline_mode = #tpu.pipeline_mode<synchronous>, transform_indices = @transform_3, window_bounds = array<i64: 16, 1>}, {pipeline_mode = #tpu.pipeline_mode<synchronous>, transform_indices = @transform_4, window_bounds = array<i64: 1, 16>}, {transform_indices = @transform_5, window_bounds = array<i64: 1, 1, 1>}, {transform_indices = @transform_6, window_bounds = array<i64: 1, 1, 1>}]} {
    %c16_i32 = arith.constant 16 : i32
    %0 = arith.muli %arg0, %c16_i32 : i32
    %1 = tpu.assume_multiple %0, 16 : i32
    %2 = tpu.iota {dimensions = array<i32: 1>} : vector<1x8xi32>
    %cst = arith.constant 0.000000e+00 : f32
    %3 = vector.broadcast %cst : f32 to vector<1x1xf32>
    %c0_i32 = arith.constant 0 : i32
    %4 = vector.broadcast %c0_i32 : i32 to vector<1x1xi32>
    %cst_0 = arith.constant 1.000000e+30 : f32
    %cst_1 = arith.constant 1.000000e+00 : f32
    %c0_i32_2 = arith.constant 0 : i32
    %c2_i32 = arith.constant 2 : i32
    %5 = arith.addi %c0_i32_2, %c2_i32 : i32
    %c1_i32 = arith.constant 1 : i32
    %6:2 = scf.for %arg9 = %c0_i32_2 to %5 step %c1_i32 iter_args(%arg10 = %3, %arg11 = %4) -> (vector<1x1xf32>, vector<1x1xi32>)  : i32 {
      %c8_i32 = arith.constant 8 : i32
      %11 = arith.muli %arg9, %c8_i32 : i32
      %12 = arith.addi %1, %11 : i32
      %13 = tpu.assume_multiple %12, 8 : i32
      %c0_9 = arith.constant 0 : index
      %c0_10 = arith.constant 0 : index
      %14 = vector.load %arg2[%c0_9, %c0_10] : memref<16x32xf32, #tpu.memory_space<vmem>>, vector<16x32xf32>
      %15 = arith.index_cast %13 : i32 to index
      %c0_11 = arith.constant 0 : index
      %16 = vector.load %arg2[%15, %c0_11] : memref<16x32xf32, #tpu.memory_space<vmem>>, vector<8x32xf32>
      %c0_12 = arith.constant 0 : index
      %c0_13 = arith.constant 0 : index
      %17 = vector.load %arg3[%c0_12, %c0_13] : memref<16x1xf32, #tpu.memory_space<vmem>>, vector<16x1xf32>
      %c0_14 = arith.constant 0 : index
      %c0_15 = arith.constant 0 : index
      %18 = vector.load %arg4[%c0_14, %c0_15] : memref<1x16xf32, #tpu.memory_space<vmem>>, vector<1x16xf32>
      %19 = arith.index_cast %13 : i32 to index
      %c0_16 = arith.constant 0 : index
      %20 = vector.load %arg3[%19, %c0_16] : memref<16x1xf32, #tpu.memory_space<vmem>>, vector<8x1xf32>
      %c0_17 = arith.constant 0 : index
      %c0_18 = arith.constant 0 : index
      %21 = vector.load %arg5[%c0_17, %c0_18] : memref<16x1xi32, #tpu.memory_space<vmem>>, vector<16x1xi32>
      %c0_19 = arith.constant 0 : index
      %c0_20 = arith.constant 0 : index
      %22 = vector.load %arg6[%c0_19, %c0_20] : memref<1x16xi32, #tpu.memory_space<vmem>>, vector<1x16xi32>
      %cst_21 = arith.constant dense<0.000000e+00> : vector<8x16xf32>
      %23 = tpu.matmul %16, %14, %cst_21 {dimension_numbers = #tpu.dot_dimension_numbers<[1], [1], [0], [0], [0, 0, 1, 0], [], []>} : vector<8x32xf32>, vector<16x32xf32>, vector<8x16xf32> -> vector<8x16xf32>
      %cst_22 = arith.constant -2.000000e+00 : f32
      %24 = vector.broadcast %cst_22 : f32 to vector<8x16xf32>
      %25 = arith.mulf %24, %23 : vector<8x16xf32>
      %26 = vector.broadcast %20 : vector<8x1xf32> to vector<8x16xf32>
      %27 = arith.addf %25, %26 : vector<8x16xf32>
      %28 = vector.broadcast %18 : vector<1x16xf32> to vector<8x16xf32>
      %29 = arith.addf %27, %28 : vector<8x16xf32>
      %cst_23 = arith.constant dense<0.000000e+00> : vector<16x8xf32>
      %30 = tpu.matmul %14, %16, %cst_23 {dimension_numbers = #tpu.dot_dimension_numbers<[1], [1], [0], [0], [0, 0, 1, 0], [], []>} : vector<16x32xf32>, vector<8x32xf32>, vector<16x8xf32> -> vector<16x8xf32>
      %c0_i32_24 = arith.constant 0 : i32
      %31 = arith.addi %13, %c0_i32_24 : i32
      %32 = arith.index_cast %31 : i32 to index
      %33 = memref.load %arg1[%32] : memref<16xi32, #tpu.memory_space<smem>>
      %34 = vector.broadcast %33 : i32 to vector<1x16xi32>
      %35 = arith.cmpi eq, %22, %34 : vector<1x16xi32>
      %36 = vector.extract_strided_slice %29 {offsets = [0, 0], sizes = [1, 16], strides = [1, 1]} : vector<8x16xf32> to vector<1x16xf32>
      %37 = vector.broadcast %cst_0 : f32 to vector<1x16xf32>
      %38 = arith.select %35, %37, %36 : vector<1x16xi1>, vector<1x16xf32>
      %c0_i32_25 = arith.constant 0 : i32
      %39 = vector.broadcast %c0_i32_25 : i32 to vector<1x8xi32>
      %40 = arith.cmpi eq, %2, %39 : vector<1x8xi32>
      %cst_26 = arith.constant 0.000000e+00 : f32
      %41 = vector.shape_cast %40 : vector<1x8xi1> to vector<1x8xi1>
      %42 = vector.broadcast %41 : vector<1x8xi1> to vector<16x8xi1>
      %43 = vector.broadcast %cst_26 : f32 to vector<16x8xf32>
      %44 = arith.select %42, %30, %43 : vector<16x8xi1>, vector<16x8xf32>
      %cst_27 = arith.constant dense<0.000000e+00> : vector<16xf32>
      %45 = vector.multi_reduction <add>, %44, %cst_27 [1] : vector<16x8xf32> to vector<16xf32>
      %46 = vector.shape_cast %45 : vector<16xf32> to vector<16x1xf32>
      %cst_28 = arith.constant -2.000000e+00 : f32
      %47 = vector.broadcast %cst_28 : f32 to vector<16x1xf32>
      %48 = arith.mulf %47, %46 : vector<16x1xf32>
      %49 = arith.addf %48, %17 : vector<16x1xf32>
      %50 = vector.extract_strided_slice %20 {offsets = [0, 0], sizes = [1, 1], strides = [1, 1]} : vector<8x1xf32> to vector<1x1xf32>
      %51 = vector.broadcast %cst_1 : f32 to vector<1x1xf32>
      %52 = arith.addf %50, %51 : vector<1x1xf32>
      %53 = vector.broadcast %52 : vector<1x1xf32> to vector<16x1xf32>
      %54 = arith.addf %49, %53 : vector<16x1xf32>
      %55 = vector.broadcast %54 : vector<16x1xf32> to vector<16x16xf32>
      %56 = vector.broadcast %38 : vector<1x16xf32> to vector<16x16xf32>
      %57 = arith.subf %55, %56 : vector<16x16xf32>
      %cst_29 = arith.constant 0.000000e+00 : f32
      %58 = vector.broadcast %cst_29 : f32 to vector<16x16xf32>
      %59 = arith.cmpf ogt, %57, %58 : vector<16x16xf32>
      %60 = vector.broadcast %cst_1 : f32 to vector<16x16xf32>
      %61 = arith.cmpf olt, %57, %60 : vector<16x16xf32>
      %62 = arith.andi %59, %61 : vector<16x16xi1>
      %cst_30 = arith.constant 0.000000e+00 : f32
      %63 = vector.broadcast %cst_30 : f32 to vector<16x16xf32>
      %64 = arith.select %62, %57, %63 : vector<16x16xi1>, vector<16x16xf32>
      %cst_31 = arith.constant dense<0.000000e+00> : vector<16xf32>
      %65 = vector.multi_reduction <add>, %64, %cst_31 [1] : vector<16x16xf32> to vector<16xf32>
      %66 = vector.shape_cast %65 : vector<16xf32> to vector<16x1xf32>
      %67 = arith.extui %62 : vector<16x16xi1> to vector<16x16xi32>
      %cst_32 = arith.constant dense<0> : vector<16xi32>
      %68 = vector.multi_reduction <add>, %67, %cst_32 [1] : vector<16x16xi32> to vector<16xi32>
      %69 = vector.shape_cast %68 : vector<16xi32> to vector<16x1xi32>
      %70 = vector.broadcast %33 : i32 to vector<16x1xi32>
      %71 = arith.cmpi eq, %21, %70 : vector<16x1xi32>
      %cst_33 = arith.constant 0.000000e+00 : f32
      %72 = vector.broadcast %cst_33 : f32 to vector<16x1xf32>
      %73 = arith.select %71, %66, %72 : vector<16x1xi1>, vector<16x1xf32>
      %74 = vector.shape_cast %73 : vector<16x1xf32> to vector<1x16x1xf32>
      %cst_34 = arith.constant dense<0.000000e+00> : vector<1xf32>
      %75 = vector.multi_reduction <add>, %74, %cst_34 [1, 2] : vector<1x16x1xf32> to vector<1xf32>
      %76 = vector.shape_cast %75 : vector<1xf32> to vector<1x1x1xf32>
      %77 = vector.extract %76[0, 0, 0] : f32 from vector<1x1x1xf32>
      %78 = vector.broadcast %77 : f32 to vector<1x1xf32>
      %79 = arith.addf %arg10, %78 : vector<1x1xf32>
      %c0_i32_35 = arith.constant 0 : i32
      %80 = vector.broadcast %c0_i32_35 : i32 to vector<16x1xi32>
      %81 = arith.select %71, %69, %80 : vector<16x1xi1>, vector<16x1xi32>
      %82 = vector.shape_cast %81 : vector<16x1xi32> to vector<1x16x1xi32>
      %cst_36 = arith.constant dense<0> : vector<1xi32>
      %83 = vector.multi_reduction <add>, %82, %cst_36 [1, 2] : vector<1x16x1xi32> to vector<1xi32>
      %84 = vector.shape_cast %83 : vector<1xi32> to vector<1x1x1xi32>
      %85 = vector.extract %84[0, 0, 0] : i32 from vector<1x1x1xi32>
      %86 = vector.broadcast %85 : i32 to vector<1x1xi32>
      %87 = arith.addi %arg11, %86 : vector<1x1xi32>
      %c1_i32_37 = arith.constant 1 : i32
      %88 = arith.addi %13, %c1_i32_37 : i32
      %89 = arith.index_cast %88 : i32 to index
      %90 = memref.load %arg1[%89] : memref<16xi32, #tpu.memory_space<smem>>
      %91 = vector.broadcast %90 : i32 to vector<1x16xi32>
      %92 = arith.cmpi eq, %22, %91 : vector<1x16xi32>
      %93 = vector.extract_strided_slice %29 {offsets = [1, 0], sizes = [1, 16], strides = [1, 1]} : vector<8x16xf32> to vector<1x16xf32>
      %94 = vector.broadcast %cst_0 : f32 to vector<1x16xf32>
      %95 = arith.select %92, %94, %93 : vector<1x16xi1>, vector<1x16xf32>
      %c1_i32_38 = arith.constant 1 : i32
      %96 = vector.broadcast %c1_i32_38 : i32 to vector<1x8xi32>
      %97 = arith.cmpi eq, %2, %96 : vector<1x8xi32>
      %cst_39 = arith.constant 0.000000e+00 : f32
      %98 = vector.shape_cast %97 : vector<1x8xi1> to vector<1x8xi1>
      %99 = vector.broadcast %98 : vector<1x8xi1> to vector<16x8xi1>
      %100 = vector.broadcast %cst_39 : f32 to vector<16x8xf32>
      %101 = arith.select %99, %30, %100 : vector<16x8xi1>, vector<16x8xf32>
      %cst_40 = arith.constant dense<0.000000e+00> : vector<16xf32>
      %102 = vector.multi_reduction <add>, %101, %cst_40 [1] : vector<16x8xf32> to vector<16xf32>
      %103 = vector.shape_cast %102 : vector<16xf32> to vector<16x1xf32>
      %cst_41 = arith.constant -2.000000e+00 : f32
      %104 = vector.broadcast %cst_41 : f32 to vector<16x1xf32>
      %105 = arith.mulf %104, %103 : vector<16x1xf32>
      %106 = arith.addf %105, %17 : vector<16x1xf32>
      %107 = vector.extract_strided_slice %20 {offsets = [1, 0], sizes = [1, 1], strides = [1, 1]} : vector<8x1xf32> to vector<1x1xf32>
      %108 = vector.broadcast %cst_1 : f32 to vector<1x1xf32>
      %109 = arith.addf %107, %108 : vector<1x1xf32>
      %110 = vector.broadcast %109 : vector<1x1xf32> to vector<16x1xf32>
      %111 = arith.addf %106, %110 : vector<16x1xf32>
      %112 = vector.broadcast %111 : vector<16x1xf32> to vector<16x16xf32>
      %113 = vector.broadcast %95 : vector<1x16xf32> to vector<16x16xf32>
      %114 = arith.subf %112, %113 : vector<16x16xf32>
      %cst_42 = arith.constant 0.000000e+00 : f32
      %115 = vector.broadcast %cst_42 : f32 to vector<16x16xf32>
      %116 = arith.cmpf ogt, %114, %115 : vector<16x16xf32>
      %117 = vector.broadcast %cst_1 : f32 to vector<16x16xf32>
      %118 = arith.cmpf olt, %114, %117 : vector<16x16xf32>
      %119 = arith.andi %116, %118 : vector<16x16xi1>
      %cst_43 = arith.constant 0.000000e+00 : f32
      %120 = vector.broadcast %cst_43 : f32 to vector<16x16xf32>
      %121 = arith.select %119, %114, %120 : vector<16x16xi1>, vector<16x16xf32>
      %cst_44 = arith.constant dense<0.000000e+00> : vector<16xf32>
      %122 = vector.multi_reduction <add>, %121, %cst_44 [1] : vector<16x16xf32> to vector<16xf32>
      %123 = vector.shape_cast %122 : vector<16xf32> to vector<16x1xf32>
      %124 = arith.extui %119 : vector<16x16xi1> to vector<16x16xi32>
      %cst_45 = arith.constant dense<0> : vector<16xi32>
      %125 = vector.multi_reduction <add>, %124, %cst_45 [1] : vector<16x16xi32> to vector<16xi32>
      %126 = vector.shape_cast %125 : vector<16xi32> to vector<16x1xi32>
      %127 = vector.broadcast %90 : i32 to vector<16x1xi32>
      %128 = arith.cmpi eq, %21, %127 : vector<16x1xi32>
      %cst_46 = arith.constant 0.000000e+00 : f32
      %129 = vector.broadcast %cst_46 : f32 to vector<16x1xf32>
      %130 = arith.select %128, %123, %129 : vector<16x1xi1>, vector<16x1xf32>
      %131 = vector.shape_cast %130 : vector<16x1xf32> to vector<1x16x1xf32>
      %cst_47 = arith.constant dense<0.000000e+00> : vector<1xf32>
      %132 = vector.multi_reduction <add>, %131, %cst_47 [1, 2] : vector<1x16x1xf32> to vector<1xf32>
      %133 = vector.shape_cast %132 : vector<1xf32> to vector<1x1x1xf32>
      %134 = vector.extract %133[0, 0, 0] : f32 from vector<1x1x1xf32>
      %135 = vector.broadcast %134 : f32 to vector<1x1xf32>
      %136 = arith.addf %79, %135 : vector<1x1xf32>
      %c0_i32_48 = arith.constant 0 : i32
      %137 = vector.broadcast %c0_i32_48 : i32 to vector<16x1xi32>
      %138 = arith.select %128, %126, %137 : vector<16x1xi1>, vector<16x1xi32>
      %139 = vector.shape_cast %138 : vector<16x1xi32> to vector<1x16x1xi32>
      %cst_49 = arith.constant dense<0> : vector<1xi32>
      %140 = vector.multi_reduction <add>, %139, %cst_49 [1, 2] : vector<1x16x1xi32> to vector<1xi32>
      %141 = vector.shape_cast %140 : vector<1xi32> to vector<1x1x1xi32>
      %142 = vector.extract %141[0, 0, 0] : i32 from vector<1x1x1xi32>
      %143 = vector.broadcast %142 : i32 to vector<1x1xi32>
      %144 = arith.addi %87, %143 : vector<1x1xi32>
      %c2_i32_50 = arith.constant 2 : i32
      %145 = arith.addi %13, %c2_i32_50 : i32
      %146 = arith.index_cast %145 : i32 to index
      %147 = memref.load %arg1[%146] : memref<16xi32, #tpu.memory_space<smem>>
      %148 = vector.broadcast %147 : i32 to vector<1x16xi32>
      %149 = arith.cmpi eq, %22, %148 : vector<1x16xi32>
      %150 = vector.extract_strided_slice %29 {offsets = [2, 0], sizes = [1, 16], strides = [1, 1]} : vector<8x16xf32> to vector<1x16xf32>
      %151 = vector.broadcast %cst_0 : f32 to vector<1x16xf32>
      %152 = arith.select %149, %151, %150 : vector<1x16xi1>, vector<1x16xf32>
      %c2_i32_51 = arith.constant 2 : i32
      %153 = vector.broadcast %c2_i32_51 : i32 to vector<1x8xi32>
      %154 = arith.cmpi eq, %2, %153 : vector<1x8xi32>
      %cst_52 = arith.constant 0.000000e+00 : f32
      %155 = vector.shape_cast %154 : vector<1x8xi1> to vector<1x8xi1>
      %156 = vector.broadcast %155 : vector<1x8xi1> to vector<16x8xi1>
      %157 = vector.broadcast %cst_52 : f32 to vector<16x8xf32>
      %158 = arith.select %156, %30, %157 : vector<16x8xi1>, vector<16x8xf32>
      %cst_53 = arith.constant dense<0.000000e+00> : vector<16xf32>
      %159 = vector.multi_reduction <add>, %158, %cst_53 [1] : vector<16x8xf32> to vector<16xf32>
      %160 = vector.shape_cast %159 : vector<16xf32> to vector<16x1xf32>
      %cst_54 = arith.constant -2.000000e+00 : f32
      %161 = vector.broadcast %cst_54 : f32 to vector<16x1xf32>
      %162 = arith.mulf %161, %160 : vector<16x1xf32>
      %163 = arith.addf %162, %17 : vector<16x1xf32>
      %164 = vector.extract_strided_slice %20 {offsets = [2, 0], sizes = [1, 1], strides = [1, 1]} : vector<8x1xf32> to vector<1x1xf32>
      %165 = vector.broadcast %cst_1 : f32 to vector<1x1xf32>
      %166 = arith.addf %164, %165 : vector<1x1xf32>
      %167 = vector.broadcast %166 : vector<1x1xf32> to vector<16x1xf32>
      %168 = arith.addf %163, %167 : vector<16x1xf32>
      %169 = vector.broadcast %168 : vector<16x1xf32> to vector<16x16xf32>
      %170 = vector.broadcast %152 : vector<1x16xf32> to vector<16x16xf32>
      %171 = arith.subf %169, %170 : vector<16x16xf32>
      %cst_55 = arith.constant 0.000000e+00 : f32
      %172 = vector.broadcast %cst_55 : f32 to vector<16x16xf32>
      %173 = arith.cmpf ogt, %171, %172 : vector<16x16xf32>
      %174 = vector.broadcast %cst_1 : f32 to vector<16x16xf32>
      %175 = arith.cmpf olt, %171, %174 : vector<16x16xf32>
      %176 = arith.andi %173, %175 : vector<16x16xi1>
      %cst_56 = arith.constant 0.000000e+00 : f32
      %177 = vector.broadcast %cst_56 : f32 to vector<16x16xf32>
      %178 = arith.select %176, %171, %177 : vector<16x16xi1>, vector<16x16xf32>
      %cst_57 = arith.constant dense<0.000000e+00> : vector<16xf32>
      %179 = vector.multi_reduction <add>, %178, %cst_57 [1] : vector<16x16xf32> to vector<16xf32>
      %180 = vector.shape_cast %179 : vector<16xf32> to vector<16x1xf32>
      %181 = arith.extui %176 : vector<16x16xi1> to vector<16x16xi32>
      %cst_58 = arith.constant dense<0> : vector<16xi32>
      %182 = vector.multi_reduction <add>, %181, %cst_58 [1] : vector<16x16xi32> to vector<16xi32>
      %183 = vector.shape_cast %182 : vector<16xi32> to vector<16x1xi32>
      %184 = vector.broadcast %147 : i32 to vector<16x1xi32>
      %185 = arith.cmpi eq, %21, %184 : vector<16x1xi32>
      %cst_59 = arith.constant 0.000000e+00 : f32
      %186 = vector.broadcast %cst_59 : f32 to vector<16x1xf32>
      %187 = arith.select %185, %180, %186 : vector<16x1xi1>, vector<16x1xf32>
      %188 = vector.shape_cast %187 : vector<16x1xf32> to vector<1x16x1xf32>
      %cst_60 = arith.constant dense<0.000000e+00> : vector<1xf32>
      %189 = vector.multi_reduction <add>, %188, %cst_60 [1, 2] : vector<1x16x1xf32> to vector<1xf32>
      %190 = vector.shape_cast %189 : vector<1xf32> to vector<1x1x1xf32>
      %191 = vector.extract %190[0, 0, 0] : f32 from vector<1x1x1xf32>
      %192 = vector.broadcast %191 : f32 to vector<1x1xf32>
      %193 = arith.addf %136, %192 : vector<1x1xf32>
      %c0_i32_61 = arith.constant 0 : i32
      %194 = vector.broadcast %c0_i32_61 : i32 to vector<16x1xi32>
      %195 = arith.select %185, %183, %194 : vector<16x1xi1>, vector<16x1xi32>
      %196 = vector.shape_cast %195 : vector<16x1xi32> to vector<1x16x1xi32>
      %cst_62 = arith.constant dense<0> : vector<1xi32>
      %197 = vector.multi_reduction <add>, %196, %cst_62 [1, 2] : vector<1x16x1xi32> to vector<1xi32>
      %198 = vector.shape_cast %197 : vector<1xi32> to vector<1x1x1xi32>
      %199 = vector.extract %198[0, 0, 0] : i32 from vector<1x1x1xi32>
      %200 = vector.broadcast %199 : i32 to vector<1x1xi32>
      %201 = arith.addi %144, %200 : vector<1x1xi32>
      %c3_i32 = arith.constant 3 : i32
      %202 = arith.addi %13, %c3_i32 : i32
      %203 = arith.index_cast %202 : i32 to index
      %204 = memref.load %arg1[%203] : memref<16xi32, #tpu.memory_space<smem>>
      %205 = vector.broadcast %204 : i32 to vector<1x16xi32>
      %206 = arith.cmpi eq, %22, %205 : vector<1x16xi32>
      %207 = vector.extract_strided_slice %29 {offsets = [3, 0], sizes = [1, 16], strides = [1, 1]} : vector<8x16xf32> to vector<1x16xf32>
      %208 = vector.broadcast %cst_0 : f32 to vector<1x16xf32>
      %209 = arith.select %206, %208, %207 : vector<1x16xi1>, vector<1x16xf32>
      %c3_i32_63 = arith.constant 3 : i32
      %210 = vector.broadcast %c3_i32_63 : i32 to vector<1x8xi32>
      %211 = arith.cmpi eq, %2, %210 : vector<1x8xi32>
      %cst_64 = arith.constant 0.000000e+00 : f32
      %212 = vector.shape_cast %211 : vector<1x8xi1> to vector<1x8xi1>
      %213 = vector.broadcast %212 : vector<1x8xi1> to vector<16x8xi1>
      %214 = vector.broadcast %cst_64 : f32 to vector<16x8xf32>
      %215 = arith.select %213, %30, %214 : vector<16x8xi1>, vector<16x8xf32>
      %cst_65 = arith.constant dense<0.000000e+00> : vector<16xf32>
      %216 = vector.multi_reduction <add>, %215, %cst_65 [1] : vector<16x8xf32> to vector<16xf32>
      %217 = vector.shape_cast %216 : vector<16xf32> to vector<16x1xf32>
      %cst_66 = arith.constant -2.000000e+00 : f32
      %218 = vector.broadcast %cst_66 : f32 to vector<16x1xf32>
      %219 = arith.mulf %218, %217 : vector<16x1xf32>
      %220 = arith.addf %219, %17 : vector<16x1xf32>
      %221 = vector.extract_strided_slice %20 {offsets = [3, 0], sizes = [1, 1], strides = [1, 1]} : vector<8x1xf32> to vector<1x1xf32>
      %222 = vector.broadcast %cst_1 : f32 to vector<1x1xf32>
      %223 = arith.addf %221, %222 : vector<1x1xf32>
      %224 = vector.broadcast %223 : vector<1x1xf32> to vector<16x1xf32>
      %225 = arith.addf %220, %224 : vector<16x1xf32>
      %226 = vector.broadcast %225 : vector<16x1xf32> to vector<16x16xf32>
      %227 = vector.broadcast %209 : vector<1x16xf32> to vector<16x16xf32>
      %228 = arith.subf %226, %227 : vector<16x16xf32>
      %cst_67 = arith.constant 0.000000e+00 : f32
      %229 = vector.broadcast %cst_67 : f32 to vector<16x16xf32>
      %230 = arith.cmpf ogt, %228, %229 : vector<16x16xf32>
      %231 = vector.broadcast %cst_1 : f32 to vector<16x16xf32>
      %232 = arith.cmpf olt, %228, %231 : vector<16x16xf32>
      %233 = arith.andi %230, %232 : vector<16x16xi1>
      %cst_68 = arith.constant 0.000000e+00 : f32
      %234 = vector.broadcast %cst_68 : f32 to vector<16x16xf32>
      %235 = arith.select %233, %228, %234 : vector<16x16xi1>, vector<16x16xf32>
      %cst_69 = arith.constant dense<0.000000e+00> : vector<16xf32>
      %236 = vector.multi_reduction <add>, %235, %cst_69 [1] : vector<16x16xf32> to vector<16xf32>
      %237 = vector.shape_cast %236 : vector<16xf32> to vector<16x1xf32>
      %238 = arith.extui %233 : vector<16x16xi1> to vector<16x16xi32>
      %cst_70 = arith.constant dense<0> : vector<16xi32>
      %239 = vector.multi_reduction <add>, %238, %cst_70 [1] : vector<16x16xi32> to vector<16xi32>
      %240 = vector.shape_cast %239 : vector<16xi32> to vector<16x1xi32>
      %241 = vector.broadcast %204 : i32 to vector<16x1xi32>
      %242 = arith.cmpi eq, %21, %241 : vector<16x1xi32>
      %cst_71 = arith.constant 0.000000e+00 : f32
      %243 = vector.broadcast %cst_71 : f32 to vector<16x1xf32>
      %244 = arith.select %242, %237, %243 : vector<16x1xi1>, vector<16x1xf32>
      %245 = vector.shape_cast %244 : vector<16x1xf32> to vector<1x16x1xf32>
      %cst_72 = arith.constant dense<0.000000e+00> : vector<1xf32>
      %246 = vector.multi_reduction <add>, %245, %cst_72 [1, 2] : vector<1x16x1xf32> to vector<1xf32>
      %247 = vector.shape_cast %246 : vector<1xf32> to vector<1x1x1xf32>
      %248 = vector.extract %247[0, 0, 0] : f32 from vector<1x1x1xf32>
      %249 = vector.broadcast %248 : f32 to vector<1x1xf32>
      %250 = arith.addf %193, %249 : vector<1x1xf32>
      %c0_i32_73 = arith.constant 0 : i32
      %251 = vector.broadcast %c0_i32_73 : i32 to vector<16x1xi32>
      %252 = arith.select %242, %240, %251 : vector<16x1xi1>, vector<16x1xi32>
      %253 = vector.shape_cast %252 : vector<16x1xi32> to vector<1x16x1xi32>
      %cst_74 = arith.constant dense<0> : vector<1xi32>
      %254 = vector.multi_reduction <add>, %253, %cst_74 [1, 2] : vector<1x16x1xi32> to vector<1xi32>
      %255 = vector.shape_cast %254 : vector<1xi32> to vector<1x1x1xi32>
      %256 = vector.extract %255[0, 0, 0] : i32 from vector<1x1x1xi32>
      %257 = vector.broadcast %256 : i32 to vector<1x1xi32>
      %258 = arith.addi %201, %257 : vector<1x1xi32>
      %c4_i32 = arith.constant 4 : i32
      %259 = arith.addi %13, %c4_i32 : i32
      %260 = arith.index_cast %259 : i32 to index
      %261 = memref.load %arg1[%260] : memref<16xi32, #tpu.memory_space<smem>>
      %262 = vector.broadcast %261 : i32 to vector<1x16xi32>
      %263 = arith.cmpi eq, %22, %262 : vector<1x16xi32>
      %264 = vector.extract_strided_slice %29 {offsets = [4, 0], sizes = [1, 16], strides = [1, 1]} : vector<8x16xf32> to vector<1x16xf32>
      %265 = vector.broadcast %cst_0 : f32 to vector<1x16xf32>
      %266 = arith.select %263, %265, %264 : vector<1x16xi1>, vector<1x16xf32>
      %c4_i32_75 = arith.constant 4 : i32
      %267 = vector.broadcast %c4_i32_75 : i32 to vector<1x8xi32>
      %268 = arith.cmpi eq, %2, %267 : vector<1x8xi32>
      %cst_76 = arith.constant 0.000000e+00 : f32
      %269 = vector.shape_cast %268 : vector<1x8xi1> to vector<1x8xi1>
      %270 = vector.broadcast %269 : vector<1x8xi1> to vector<16x8xi1>
      %271 = vector.broadcast %cst_76 : f32 to vector<16x8xf32>
      %272 = arith.select %270, %30, %271 : vector<16x8xi1>, vector<16x8xf32>
      %cst_77 = arith.constant dense<0.000000e+00> : vector<16xf32>
      %273 = vector.multi_reduction <add>, %272, %cst_77 [1] : vector<16x8xf32> to vector<16xf32>
      %274 = vector.shape_cast %273 : vector<16xf32> to vector<16x1xf32>
      %cst_78 = arith.constant -2.000000e+00 : f32
      %275 = vector.broadcast %cst_78 : f32 to vector<16x1xf32>
      %276 = arith.mulf %275, %274 : vector<16x1xf32>
      %277 = arith.addf %276, %17 : vector<16x1xf32>
      %278 = vector.extract_strided_slice %20 {offsets = [4, 0], sizes = [1, 1], strides = [1, 1]} : vector<8x1xf32> to vector<1x1xf32>
      %279 = vector.broadcast %cst_1 : f32 to vector<1x1xf32>
      %280 = arith.addf %278, %279 : vector<1x1xf32>
      %281 = vector.broadcast %280 : vector<1x1xf32> to vector<16x1xf32>
      %282 = arith.addf %277, %281 : vector<16x1xf32>
      %283 = vector.broadcast %282 : vector<16x1xf32> to vector<16x16xf32>
      %284 = vector.broadcast %266 : vector<1x16xf32> to vector<16x16xf32>
      %285 = arith.subf %283, %284 : vector<16x16xf32>
      %cst_79 = arith.constant 0.000000e+00 : f32
      %286 = vector.broadcast %cst_79 : f32 to vector<16x16xf32>
      %287 = arith.cmpf ogt, %285, %286 : vector<16x16xf32>
      %288 = vector.broadcast %cst_1 : f32 to vector<16x16xf32>
      %289 = arith.cmpf olt, %285, %288 : vector<16x16xf32>
      %290 = arith.andi %287, %289 : vector<16x16xi1>
      %cst_80 = arith.constant 0.000000e+00 : f32
      %291 = vector.broadcast %cst_80 : f32 to vector<16x16xf32>
      %292 = arith.select %290, %285, %291 : vector<16x16xi1>, vector<16x16xf32>
      %cst_81 = arith.constant dense<0.000000e+00> : vector<16xf32>
      %293 = vector.multi_reduction <add>, %292, %cst_81 [1] : vector<16x16xf32> to vector<16xf32>
      %294 = vector.shape_cast %293 : vector<16xf32> to vector<16x1xf32>
      %295 = arith.extui %290 : vector<16x16xi1> to vector<16x16xi32>
      %cst_82 = arith.constant dense<0> : vector<16xi32>
      %296 = vector.multi_reduction <add>, %295, %cst_82 [1] : vector<16x16xi32> to vector<16xi32>
      %297 = vector.shape_cast %296 : vector<16xi32> to vector<16x1xi32>
      %298 = vector.broadcast %261 : i32 to vector<16x1xi32>
      %299 = arith.cmpi eq, %21, %298 : vector<16x1xi32>
      %cst_83 = arith.constant 0.000000e+00 : f32
      %300 = vector.broadcast %cst_83 : f32 to vector<16x1xf32>
      %301 = arith.select %299, %294, %300 : vector<16x1xi1>, vector<16x1xf32>
      %302 = vector.shape_cast %301 : vector<16x1xf32> to vector<1x16x1xf32>
      %cst_84 = arith.constant dense<0.000000e+00> : vector<1xf32>
      %303 = vector.multi_reduction <add>, %302, %cst_84 [1, 2] : vector<1x16x1xf32> to vector<1xf32>
      %304 = vector.shape_cast %303 : vector<1xf32> to vector<1x1x1xf32>
      %305 = vector.extract %304[0, 0, 0] : f32 from vector<1x1x1xf32>
      %306 = vector.broadcast %305 : f32 to vector<1x1xf32>
      %307 = arith.addf %250, %306 : vector<1x1xf32>
      %c0_i32_85 = arith.constant 0 : i32
      %308 = vector.broadcast %c0_i32_85 : i32 to vector<16x1xi32>
      %309 = arith.select %299, %297, %308 : vector<16x1xi1>, vector<16x1xi32>
      %310 = vector.shape_cast %309 : vector<16x1xi32> to vector<1x16x1xi32>
      %cst_86 = arith.constant dense<0> : vector<1xi32>
      %311 = vector.multi_reduction <add>, %310, %cst_86 [1, 2] : vector<1x16x1xi32> to vector<1xi32>
      %312 = vector.shape_cast %311 : vector<1xi32> to vector<1x1x1xi32>
      %313 = vector.extract %312[0, 0, 0] : i32 from vector<1x1x1xi32>
      %314 = vector.broadcast %313 : i32 to vector<1x1xi32>
      %315 = arith.addi %258, %314 : vector<1x1xi32>
      %c5_i32 = arith.constant 5 : i32
      %316 = arith.addi %13, %c5_i32 : i32
      %317 = arith.index_cast %316 : i32 to index
      %318 = memref.load %arg1[%317] : memref<16xi32, #tpu.memory_space<smem>>
      %319 = vector.broadcast %318 : i32 to vector<1x16xi32>
      %320 = arith.cmpi eq, %22, %319 : vector<1x16xi32>
      %321 = vector.extract_strided_slice %29 {offsets = [5, 0], sizes = [1, 16], strides = [1, 1]} : vector<8x16xf32> to vector<1x16xf32>
      %322 = vector.broadcast %cst_0 : f32 to vector<1x16xf32>
      %323 = arith.select %320, %322, %321 : vector<1x16xi1>, vector<1x16xf32>
      %c5_i32_87 = arith.constant 5 : i32
      %324 = vector.broadcast %c5_i32_87 : i32 to vector<1x8xi32>
      %325 = arith.cmpi eq, %2, %324 : vector<1x8xi32>
      %cst_88 = arith.constant 0.000000e+00 : f32
      %326 = vector.shape_cast %325 : vector<1x8xi1> to vector<1x8xi1>
      %327 = vector.broadcast %326 : vector<1x8xi1> to vector<16x8xi1>
      %328 = vector.broadcast %cst_88 : f32 to vector<16x8xf32>
      %329 = arith.select %327, %30, %328 : vector<16x8xi1>, vector<16x8xf32>
      %cst_89 = arith.constant dense<0.000000e+00> : vector<16xf32>
      %330 = vector.multi_reduction <add>, %329, %cst_89 [1] : vector<16x8xf32> to vector<16xf32>
      %331 = vector.shape_cast %330 : vector<16xf32> to vector<16x1xf32>
      %cst_90 = arith.constant -2.000000e+00 : f32
      %332 = vector.broadcast %cst_90 : f32 to vector<16x1xf32>
      %333 = arith.mulf %332, %331 : vector<16x1xf32>
      %334 = arith.addf %333, %17 : vector<16x1xf32>
      %335 = vector.extract_strided_slice %20 {offsets = [5, 0], sizes = [1, 1], strides = [1, 1]} : vector<8x1xf32> to vector<1x1xf32>
      %336 = vector.broadcast %cst_1 : f32 to vector<1x1xf32>
      %337 = arith.addf %335, %336 : vector<1x1xf32>
      %338 = vector.broadcast %337 : vector<1x1xf32> to vector<16x1xf32>
      %339 = arith.addf %334, %338 : vector<16x1xf32>
      %340 = vector.broadcast %339 : vector<16x1xf32> to vector<16x16xf32>
      %341 = vector.broadcast %323 : vector<1x16xf32> to vector<16x16xf32>
      %342 = arith.subf %340, %341 : vector<16x16xf32>
      %cst_91 = arith.constant 0.000000e+00 : f32
      %343 = vector.broadcast %cst_91 : f32 to vector<16x16xf32>
      %344 = arith.cmpf ogt, %342, %343 : vector<16x16xf32>
      %345 = vector.broadcast %cst_1 : f32 to vector<16x16xf32>
      %346 = arith.cmpf olt, %342, %345 : vector<16x16xf32>
      %347 = arith.andi %344, %346 : vector<16x16xi1>
      %cst_92 = arith.constant 0.000000e+00 : f32
      %348 = vector.broadcast %cst_92 : f32 to vector<16x16xf32>
      %349 = arith.select %347, %342, %348 : vector<16x16xi1>, vector<16x16xf32>
      %cst_93 = arith.constant dense<0.000000e+00> : vector<16xf32>
      %350 = vector.multi_reduction <add>, %349, %cst_93 [1] : vector<16x16xf32> to vector<16xf32>
      %351 = vector.shape_cast %350 : vector<16xf32> to vector<16x1xf32>
      %352 = arith.extui %347 : vector<16x16xi1> to vector<16x16xi32>
      %cst_94 = arith.constant dense<0> : vector<16xi32>
      %353 = vector.multi_reduction <add>, %352, %cst_94 [1] : vector<16x16xi32> to vector<16xi32>
      %354 = vector.shape_cast %353 : vector<16xi32> to vector<16x1xi32>
      %355 = vector.broadcast %318 : i32 to vector<16x1xi32>
      %356 = arith.cmpi eq, %21, %355 : vector<16x1xi32>
      %cst_95 = arith.constant 0.000000e+00 : f32
      %357 = vector.broadcast %cst_95 : f32 to vector<16x1xf32>
      %358 = arith.select %356, %351, %357 : vector<16x1xi1>, vector<16x1xf32>
      %359 = vector.shape_cast %358 : vector<16x1xf32> to vector<1x16x1xf32>
      %cst_96 = arith.constant dense<0.000000e+00> : vector<1xf32>
      %360 = vector.multi_reduction <add>, %359, %cst_96 [1, 2] : vector<1x16x1xf32> to vector<1xf32>
      %361 = vector.shape_cast %360 : vector<1xf32> to vector<1x1x1xf32>
      %362 = vector.extract %361[0, 0, 0] : f32 from vector<1x1x1xf32>
      %363 = vector.broadcast %362 : f32 to vector<1x1xf32>
      %364 = arith.addf %307, %363 : vector<1x1xf32>
      %c0_i32_97 = arith.constant 0 : i32
      %365 = vector.broadcast %c0_i32_97 : i32 to vector<16x1xi32>
      %366 = arith.select %356, %354, %365 : vector<16x1xi1>, vector<16x1xi32>
      %367 = vector.shape_cast %366 : vector<16x1xi32> to vector<1x16x1xi32>
      %cst_98 = arith.constant dense<0> : vector<1xi32>
      %368 = vector.multi_reduction <add>, %367, %cst_98 [1, 2] : vector<1x16x1xi32> to vector<1xi32>
      %369 = vector.shape_cast %368 : vector<1xi32> to vector<1x1x1xi32>
      %370 = vector.extract %369[0, 0, 0] : i32 from vector<1x1x1xi32>
      %371 = vector.broadcast %370 : i32 to vector<1x1xi32>
      %372 = arith.addi %315, %371 : vector<1x1xi32>
      %c6_i32 = arith.constant 6 : i32
      %373 = arith.addi %13, %c6_i32 : i32
      %374 = arith.index_cast %373 : i32 to index
      %375 = memref.load %arg1[%374] : memref<16xi32, #tpu.memory_space<smem>>
      %376 = vector.broadcast %375 : i32 to vector<1x16xi32>
      %377 = arith.cmpi eq, %22, %376 : vector<1x16xi32>
      %378 = vector.extract_strided_slice %29 {offsets = [6, 0], sizes = [1, 16], strides = [1, 1]} : vector<8x16xf32> to vector<1x16xf32>
      %379 = vector.broadcast %cst_0 : f32 to vector<1x16xf32>
      %380 = arith.select %377, %379, %378 : vector<1x16xi1>, vector<1x16xf32>
      %c6_i32_99 = arith.constant 6 : i32
      %381 = vector.broadcast %c6_i32_99 : i32 to vector<1x8xi32>
      %382 = arith.cmpi eq, %2, %381 : vector<1x8xi32>
      %cst_100 = arith.constant 0.000000e+00 : f32
      %383 = vector.shape_cast %382 : vector<1x8xi1> to vector<1x8xi1>
      %384 = vector.broadcast %383 : vector<1x8xi1> to vector<16x8xi1>
      %385 = vector.broadcast %cst_100 : f32 to vector<16x8xf32>
      %386 = arith.select %384, %30, %385 : vector<16x8xi1>, vector<16x8xf32>
      %cst_101 = arith.constant dense<0.000000e+00> : vector<16xf32>
      %387 = vector.multi_reduction <add>, %386, %cst_101 [1] : vector<16x8xf32> to vector<16xf32>
      %388 = vector.shape_cast %387 : vector<16xf32> to vector<16x1xf32>
      %cst_102 = arith.constant -2.000000e+00 : f32
      %389 = vector.broadcast %cst_102 : f32 to vector<16x1xf32>
      %390 = arith.mulf %389, %388 : vector<16x1xf32>
      %391 = arith.addf %390, %17 : vector<16x1xf32>
      %392 = vector.extract_strided_slice %20 {offsets = [6, 0], sizes = [1, 1], strides = [1, 1]} : vector<8x1xf32> to vector<1x1xf32>
      %393 = vector.broadcast %cst_1 : f32 to vector<1x1xf32>
      %394 = arith.addf %392, %393 : vector<1x1xf32>
      %395 = vector.broadcast %394 : vector<1x1xf32> to vector<16x1xf32>
      %396 = arith.addf %391, %395 : vector<16x1xf32>
      %397 = vector.broadcast %396 : vector<16x1xf32> to vector<16x16xf32>
      %398 = vector.broadcast %380 : vector<1x16xf32> to vector<16x16xf32>
      %399 = arith.subf %397, %398 : vector<16x16xf32>
      %cst_103 = arith.constant 0.000000e+00 : f32
      %400 = vector.broadcast %cst_103 : f32 to vector<16x16xf32>
      %401 = arith.cmpf ogt, %399, %400 : vector<16x16xf32>
      %402 = vector.broadcast %cst_1 : f32 to vector<16x16xf32>
      %403 = arith.cmpf olt, %399, %402 : vector<16x16xf32>
      %404 = arith.andi %401, %403 : vector<16x16xi1>
      %cst_104 = arith.constant 0.000000e+00 : f32
      %405 = vector.broadcast %cst_104 : f32 to vector<16x16xf32>
      %406 = arith.select %404, %399, %405 : vector<16x16xi1>, vector<16x16xf32>
      %cst_105 = arith.constant dense<0.000000e+00> : vector<16xf32>
      %407 = vector.multi_reduction <add>, %406, %cst_105 [1] : vector<16x16xf32> to vector<16xf32>
      %408 = vector.shape_cast %407 : vector<16xf32> to vector<16x1xf32>
      %409 = arith.extui %404 : vector<16x16xi1> to vector<16x16xi32>
      %cst_106 = arith.constant dense<0> : vector<16xi32>
      %410 = vector.multi_reduction <add>, %409, %cst_106 [1] : vector<16x16xi32> to vector<16xi32>
      %411 = vector.shape_cast %410 : vector<16xi32> to vector<16x1xi32>
      %412 = vector.broadcast %375 : i32 to vector<16x1xi32>
      %413 = arith.cmpi eq, %21, %412 : vector<16x1xi32>
      %cst_107 = arith.constant 0.000000e+00 : f32
      %414 = vector.broadcast %cst_107 : f32 to vector<16x1xf32>
      %415 = arith.select %413, %408, %414 : vector<16x1xi1>, vector<16x1xf32>
      %416 = vector.shape_cast %415 : vector<16x1xf32> to vector<1x16x1xf32>
      %cst_108 = arith.constant dense<0.000000e+00> : vector<1xf32>
      %417 = vector.multi_reduction <add>, %416, %cst_108 [1, 2] : vector<1x16x1xf32> to vector<1xf32>
      %418 = vector.shape_cast %417 : vector<1xf32> to vector<1x1x1xf32>
      %419 = vector.extract %418[0, 0, 0] : f32 from vector<1x1x1xf32>
      %420 = vector.broadcast %419 : f32 to vector<1x1xf32>
      %421 = arith.addf %364, %420 : vector<1x1xf32>
      %c0_i32_109 = arith.constant 0 : i32
      %422 = vector.broadcast %c0_i32_109 : i32 to vector<16x1xi32>
      %423 = arith.select %413, %411, %422 : vector<16x1xi1>, vector<16x1xi32>
      %424 = vector.shape_cast %423 : vector<16x1xi32> to vector<1x16x1xi32>
      %cst_110 = arith.constant dense<0> : vector<1xi32>
      %425 = vector.multi_reduction <add>, %424, %cst_110 [1, 2] : vector<1x16x1xi32> to vector<1xi32>
      %426 = vector.shape_cast %425 : vector<1xi32> to vector<1x1x1xi32>
      %427 = vector.extract %426[0, 0, 0] : i32 from vector<1x1x1xi32>
      %428 = vector.broadcast %427 : i32 to vector<1x1xi32>
      %429 = arith.addi %372, %428 : vector<1x1xi32>
      %c7_i32 = arith.constant 7 : i32
      %430 = arith.addi %13, %c7_i32 : i32
      %431 = arith.index_cast %430 : i32 to index
      %432 = memref.load %arg1[%431] : memref<16xi32, #tpu.memory_space<smem>>
      %433 = vector.broadcast %432 : i32 to vector<1x16xi32>
      %434 = arith.cmpi eq, %22, %433 : vector<1x16xi32>
      %435 = vector.extract_strided_slice %29 {offsets = [7, 0], sizes = [1, 16], strides = [1, 1]} : vector<8x16xf32> to vector<1x16xf32>
      %436 = vector.broadcast %cst_0 : f32 to vector<1x16xf32>
      %437 = arith.select %434, %436, %435 : vector<1x16xi1>, vector<1x16xf32>
      %c7_i32_111 = arith.constant 7 : i32
      %438 = vector.broadcast %c7_i32_111 : i32 to vector<1x8xi32>
      %439 = arith.cmpi eq, %2, %438 : vector<1x8xi32>
      %cst_112 = arith.constant 0.000000e+00 : f32
      %440 = vector.shape_cast %439 : vector<1x8xi1> to vector<1x8xi1>
      %441 = vector.broadcast %440 : vector<1x8xi1> to vector<16x8xi1>
      %442 = vector.broadcast %cst_112 : f32 to vector<16x8xf32>
      %443 = arith.select %441, %30, %442 : vector<16x8xi1>, vector<16x8xf32>
      %cst_113 = arith.constant dense<0.000000e+00> : vector<16xf32>
      %444 = vector.multi_reduction <add>, %443, %cst_113 [1] : vector<16x8xf32> to vector<16xf32>
      %445 = vector.shape_cast %444 : vector<16xf32> to vector<16x1xf32>
      %cst_114 = arith.constant -2.000000e+00 : f32
      %446 = vector.broadcast %cst_114 : f32 to vector<16x1xf32>
      %447 = arith.mulf %446, %445 : vector<16x1xf32>
      %448 = arith.addf %447, %17 : vector<16x1xf32>
      %449 = vector.extract_strided_slice %20 {offsets = [7, 0], sizes = [1, 1], strides = [1, 1]} : vector<8x1xf32> to vector<1x1xf32>
      %450 = vector.broadcast %cst_1 : f32 to vector<1x1xf32>
      %451 = arith.addf %449, %450 : vector<1x1xf32>
      %452 = vector.broadcast %451 : vector<1x1xf32> to vector<16x1xf32>
      %453 = arith.addf %448, %452 : vector<16x1xf32>
      %454 = vector.broadcast %453 : vector<16x1xf32> to vector<16x16xf32>
      %455 = vector.broadcast %437 : vector<1x16xf32> to vector<16x16xf32>
      %456 = arith.subf %454, %455 : vector<16x16xf32>
      %cst_115 = arith.constant 0.000000e+00 : f32
      %457 = vector.broadcast %cst_115 : f32 to vector<16x16xf32>
      %458 = arith.cmpf ogt, %456, %457 : vector<16x16xf32>
      %459 = vector.broadcast %cst_1 : f32 to vector<16x16xf32>
      %460 = arith.cmpf olt, %456, %459 : vector<16x16xf32>
      %461 = arith.andi %458, %460 : vector<16x16xi1>
      %cst_116 = arith.constant 0.000000e+00 : f32
      %462 = vector.broadcast %cst_116 : f32 to vector<16x16xf32>
      %463 = arith.select %461, %456, %462 : vector<16x16xi1>, vector<16x16xf32>
      %cst_117 = arith.constant dense<0.000000e+00> : vector<16xf32>
      %464 = vector.multi_reduction <add>, %463, %cst_117 [1] : vector<16x16xf32> to vector<16xf32>
      %465 = vector.shape_cast %464 : vector<16xf32> to vector<16x1xf32>
      %466 = arith.extui %461 : vector<16x16xi1> to vector<16x16xi32>
      %cst_118 = arith.constant dense<0> : vector<16xi32>
      %467 = vector.multi_reduction <add>, %466, %cst_118 [1] : vector<16x16xi32> to vector<16xi32>
      %468 = vector.shape_cast %467 : vector<16xi32> to vector<16x1xi32>
      %469 = vector.broadcast %432 : i32 to vector<16x1xi32>
      %470 = arith.cmpi eq, %21, %469 : vector<16x1xi32>
      %cst_119 = arith.constant 0.000000e+00 : f32
      %471 = vector.broadcast %cst_119 : f32 to vector<16x1xf32>
      %472 = arith.select %470, %465, %471 : vector<16x1xi1>, vector<16x1xf32>
      %473 = vector.shape_cast %472 : vector<16x1xf32> to vector<1x16x1xf32>
      %cst_120 = arith.constant dense<0.000000e+00> : vector<1xf32>
      %474 = vector.multi_reduction <add>, %473, %cst_120 [1, 2] : vector<1x16x1xf32> to vector<1xf32>
      %475 = vector.shape_cast %474 : vector<1xf32> to vector<1x1x1xf32>
      %476 = vector.extract %475[0, 0, 0] : f32 from vector<1x1x1xf32>
      %477 = vector.broadcast %476 : f32 to vector<1x1xf32>
      %478 = arith.addf %421, %477 : vector<1x1xf32>
      %c0_i32_121 = arith.constant 0 : i32
      %479 = vector.broadcast %c0_i32_121 : i32 to vector<16x1xi32>
      %480 = arith.select %470, %468, %479 : vector<16x1xi1>, vector<16x1xi32>
      %481 = vector.shape_cast %480 : vector<16x1xi32> to vector<1x16x1xi32>
      %cst_122 = arith.constant dense<0> : vector<1xi32>
      %482 = vector.multi_reduction <add>, %481, %cst_122 [1, 2] : vector<1x16x1xi32> to vector<1xi32>
      %483 = vector.shape_cast %482 : vector<1xi32> to vector<1x1x1xi32>
      %484 = vector.extract %483[0, 0, 0] : i32 from vector<1x1x1xi32>
      %485 = vector.broadcast %484 : i32 to vector<1x1xi32>
      %486 = arith.addi %429, %485 : vector<1x1xi32>
      scf.yield %478, %486 : vector<1x1xf32>, vector<1x1xi32>
    }
    %c2_i32_3 = arith.constant 2 : i32
    %7 = vector.shape_cast %6#0 : vector<1x1xf32> to vector<1x1x1xf32>
    %c0 = arith.constant 0 : index
    %c0_4 = arith.constant 0 : index
    %c0_5 = arith.constant 0 : index
    %8 = vector.load %arg7[%c0, %c0_4, %c0_5] : memref<1x1x1xf32, #tpu.memory_space<vmem>>, vector<1x1x1xf32>
    tpu.vector_store %arg7[%c0, %c0_4, %c0_5], %7 {strides = array<i32>} : memref<1x1x1xf32, #tpu.memory_space<vmem>>, vector<1x1x1xf32>,
    %9 = vector.shape_cast %6#1 : vector<1x1xi32> to vector<1x1x1xi32>
    %c0_6 = arith.constant 0 : index
    %c0_7 = arith.constant 0 : index
    %c0_8 = arith.constant 0 : index
    %10 = vector.load %arg8[%c0_6, %c0_7, %c0_8] : memref<1x1x1xi32, #tpu.memory_space<vmem>>, vector<1x1x1xi32>
    tpu.vector_store %arg8[%c0_6, %c0_7, %c0_8], %9 {strides = array<i32>} : memref<1x1x1xi32, #tpu.memory_space<vmem>>, vector<1x1x1xi32>,
    return
  }
  func.func @transform_0(%arg0: i32, %arg1: memref<16xi32, #tpu.memory_space<smem>>) -> (i32, i32) {
    %c0_i32 = arith.constant 0 : i32
    %c0_i32_0 = arith.constant 0 : i32
    %c0_i32_1 = arith.constant 0 : i32
    return %c0_i32, %c0_i32_0 : i32, i32
  }
  func.func @transform_1(%arg0: i32, %arg1: memref<16xi32, #tpu.memory_space<smem>>) -> (i32, i32) {
    %c0_i32 = arith.constant 0 : i32
    %c0_i32_0 = arith.constant 0 : i32
    %c0_i32_1 = arith.constant 0 : i32
    return %c0_i32, %c0_i32_0 : i32, i32
  }
  func.func @transform_2(%arg0: i32, %arg1: memref<16xi32, #tpu.memory_space<smem>>) -> (i32, i32) {
    %c0_i32 = arith.constant 0 : i32
    %c0_i32_0 = arith.constant 0 : i32
    %c0_i32_1 = arith.constant 0 : i32
    return %c0_i32, %c0_i32_0 : i32, i32
  }
  func.func @transform_3(%arg0: i32, %arg1: memref<16xi32, #tpu.memory_space<smem>>) -> (i32, i32) {
    %c0_i32 = arith.constant 0 : i32
    %c0_i32_0 = arith.constant 0 : i32
    %c0_i32_1 = arith.constant 0 : i32
    return %c0_i32, %c0_i32_0 : i32, i32
  }
  func.func @transform_4(%arg0: i32, %arg1: memref<16xi32, #tpu.memory_space<smem>>) -> (i32, i32) {
    %c0_i32 = arith.constant 0 : i32
    %c0_i32_0 = arith.constant 0 : i32
    %c0_i32_1 = arith.constant 0 : i32
    return %c0_i32, %c0_i32_0 : i32, i32
  }
  func.func @transform_5(%arg0: i32, %arg1: memref<16xi32, #tpu.memory_space<smem>>) -> (i32, i32, i32) {
    %c0_i32 = arith.constant 0 : i32
    %c0_i32_0 = arith.constant 0 : i32
    %c0_i32_1 = arith.constant 0 : i32
    return %arg0, %c0_i32, %c0_i32_0 : i32, i32, i32
  }
  func.func @transform_6(%arg0: i32, %arg1: memref<16xi32, #tpu.memory_space<smem>>) -> (i32, i32, i32) {
    %c0_i32 = arith.constant 0 : i32
    %c0_i32_0 = arith.constant 0 : i32
    %c0_i32_1 = arith.constant 0 : i32
    return %arg0, %c0_i32, %c0_i32_0 : i32, i32, i32
  }
}

</mosaic_0001>

<llo_original>
// kernel: tpu_custom_call.1
$region0: #{tpu_custom_call.1}
  #allocation0 [shape = 'u32[]', space=smem, size = 0x4, offset = 0x4, fixed_abs, tag = 'smem constant byte address 0x4 - core index']
  #allocation1 [shape = 'u32[144,128]{1,0:T(1,128)}', space=vmem, size = 0x12000, scoped, tag = 'internal scratch']
  #allocation2 [shape = 's32[1]{0}', space=sflag, size = 0x4, scoped, tag = 'scoped memory for tpu_custom_call.1']
  #allocation3 [shape = 'u8[512]{0}', space=smem, size = 0x200, scoped, tag = 'prefetched SMEM operand 0']
  %s0 = inlined_call_operand.vmem [shape: s32[16], index: 0, kind: input, shape index: {}]
  %s1 = inlined_call_operand.vmem [shape: f32[16,32], index: 1, kind: input, shape index: {}]
  %s2 = inlined_call_operand.vmem [shape: f32[16,1], index: 2, kind: input, shape index: {}]
  %s3 = inlined_call_operand.vmem [shape: f32[1,16], index: 3, kind: input, shape index: {}]
  %s4 = inlined_call_operand.vmem [shape: s32[16,1], index: 4, kind: input, shape index: {}]
  %s5 = inlined_call_operand.vmem [shape: s32[1,16], index: 5, kind: input, shape index: {}]
  %s6 = inlined_call_operand.hbm [shape: f32[1,1,1], index: 6, kind: output, shape index: {0}]
  %s7 = inlined_call_operand.hbm [shape: s32[1,1,1], index: 7, kind: output, shape index: {1}]
  %8 = xla_tuple %s6, %s7
  %s9 = sld [smem:[#allocation0]]
  $region45: #{tpu_custom_call.1} parent=0
    _
  %s11 = ssub.s32 1, %s9
  %s12 = scalar_select 0, %s11, %s9
  %s13 = sshll.u32 %s0, 4
  %s14 = int_to_ptr.vmem [resolvable:$true] %s13
  %16 = dma.vmem_to_smem %s14, 16, [#allocation3], [#allocation2]
  %17 = dma.done [#allocation2], 16
  %18 = sfence
  $region1: #{tpu_custom_call.1} parent=0
    #allocation4 [shape = 'u8[512]{0}', space=vmem, size = 0x400, scoped, tag = 'output window, operand 0, single buffered']
    #allocation5 [shape = 's32[1]{0}', space=sflag, size = 0x4, scoped, tag = 'scoped memory for tpu_custom_call.1']
    #allocation6 [shape = 'u8[512]{0}', space=vmem, size = 0x400, scoped, tag = 'output window, operand 1, single buffered']
    #allocation7 [shape = 's32[1]{0}', space=sflag, size = 0x4, scoped, tag = 'scoped memory for tpu_custom_call.1']
    %19 = vsyncpa [#allocation5], 0
    %20 = vsyncpa [#allocation7], 0
    // Predicated region
    $region2: #{tpu_custom_call.1} parent=1 // pred_check
      _
    $region3: #{tpu_custom_call.1} parent=1 // pred_check_branch
      %22 = sbr.rel (0) target = $region5
    $region4: #{tpu_custom_call.1} parent=1 // pred_region
      _
    $region5: #{tpu_custom_call.1} parent=1 // pred_fallthru
      _
    // Predicated region
    $region6: #{tpu_custom_call.1} parent=1 // pred_check
      _
    $region7: #{tpu_custom_call.1} parent=1 // pred_check_branch
      %24 = sbr.rel (0) target = $region9
    $region8: #{tpu_custom_call.1} parent=1 // pred_region
      _
    $region9: #{tpu_custom_call.1} parent=1 // pred_fallthru
      _
    // Predicated region
    $region10: #{tpu_custom_call.1} parent=1 // pred_check
      _
    $region11: #{tpu_custom_call.1} parent=1 // pred_check_branch
      %26 = sbr.rel (0) target = $region13
    $region12: #{tpu_custom_call.1} parent=1 // pred_region
      _
    $region13: #{tpu_custom_call.1} parent=1 // pred_fallthru
      _
    // Predicated region
    $region14: #{tpu_custom_call.1} parent=1 // pred_check
      _
    $region15: #{tpu_custom_call.1} parent=1 // pred_check_branch
      %28 = sbr.rel (0) target = $region17
    $region16: #{tpu_custom_call.1} parent=1 // pred_region
      _
    $region17: #{tpu_custom_call.1} parent=1 // pred_fallthru
      _
    // Predicated region
    $region18: #{tpu_custom_call.1} parent=1 // pred_check
      _
    $region19: #{tpu_custom_call.1} parent=1 // pred_check_branch
      %30 = sbr.rel (0) target = $region21
    $region20: #{tpu_custom_call.1} parent=1 // pred_region
      _
    $region21: #{tpu_custom_call.1} parent=1 // pred_fallthru
      _
    %s31 = smul.u32 0, 16
    %v32 = vlaneseq
    %v33 = vand.u32 %v32, 127
    loop: start=0, step=1, limit=2
    $region22: #{tpu_custom_call.1} parent=1 // loop_pre_header
      _
    $region23: #{tpu_custom_call.1} parent=1 // loop_header
      %s35 = sphi 0, %s39
      %p36 = scmp.ge.s32.totalorder %s35, 2
      %v40 = vphi 0.0, %v1298
      %v41 = vphi 0, %v1324
    $region24: #{tpu_custom_call.1} parent=1 // loop_header_branch
      %38 = sbr.rel (%p36) target = $region28
    $region25: #{tpu_custom_call.1} parent=1 // loop_body
      %s42 = smul.u32 %s35, 8
      %s43 = sadd.s32 %s31, %s42
      %v44 = vld [vmem:[%s1] sm:$0xff]
      %v45 = vld [vmem:[%s1 + $0x8] sm:$0xff]
      %s46 = scalar_lea.vmem %s1, %s43
      %v47 = vld [vmem:[%s46] sm:$0xff]
      %v48 = vld [vmem:[%s2] sm:$0xff]
      %v49 = vld [vmem:[%s2 + $0x8] sm:$0xff]
      %v50 = vld [vmem:[%s3] sm:$0x1]
      %s51 = scalar_lea.vmem %s2, %s43
      %v52 = vld [vmem:[%s51] sm:$0xff]
      %v53 = vld [vmem:[%s4] sm:$0xff]
      %v54 = vld [vmem:[%s4 + $0x8] sm:$0xff]
      %v55 = vld [vmem:[%s5] sm:$0x1]
      %vm56 = vcmask 261120
      %v58 = vsel %vm56, %v47, 0
      %v61 = vsel %vm56, %v44, 0
      %v64 = vsel %vm56, %v45, 0
      %66 = vmatprep.subr.mxu0 0.0
      %67 = vmatpush1.xpose.msra.mxu0 %v61
      %68 = vmatprep.subr.mxu0 0.0
      %69 = vmatpush1.xpose.msra.mxu0 %v64
      %70 = vmatprep.subr.mxu0 0.0
      %71 = vmatpush1.xpose.msra.mxu0 0.0
      %72 = vmatprep.subr.mxu0 0.0
      %73 = vmatpush1.xpose.msra.mxu0 0.0
      %74 = vmatprep.subr.mxu0 0.0
      %75 = vmatpush1.xpose.msra.mxu0 0.0
      %76 = vmatprep.subr.mxu0 0.0
      %77 = vmatpush1.xpose.msra.mxu0 0.0
      %78 = vmatprep.subr.mxu0 0.0
      %79 = vmatpush1.xpose.msra.mxu0 0.0
      %80 = vmatprep.subr.mxu0 0.0
      %81 = vmatpush1.xpose.msra.mxu0 0.0
      %82 = vmatprep.subr.mxu0 0.0
      %83 = vmatpush1.xpose.msra.mxu0 0.0
      %84 = vmatprep.subr.mxu0 0.0
      %85 = vmatpush1.xpose.msra.mxu0 0.0
      %86 = vmatprep.subr.mxu0 0.0
      %87 = vmatpush1.xpose.msra.mxu0 0.0
      %88 = vmatprep.subr.mxu0 0.0
      %89 = vmatpush1.xpose.msra.mxu0 0.0
      %90 = vmatprep.subr.mxu0 0.0
      %91 = vmatpush1.xpose.msra.mxu0 0.0
      %92 = vmatprep.subr.mxu0 0.0
      %93 = vmatpush1.xpose.msra.mxu0 0.0
      %94 = vmatprep.subr.mxu0 0.0
      %95 = vmatpush1.xpose.msra.mxu0 0.0
      %96 = vmatprep.subr.mxu0 0.0
      %97 = vmatpush1.xpose.msra.mxu0 0.0
      %98 = vmatprep.subr.mxu0 0.0
      %99 = vmatpush1.xpose.msra.mxu0 0.0
      %100 = vmatprep.subr.mxu0 0.0
      %101 = vmatpush1.xpose.msra.mxu0 0.0
      %102 = vmatprep.subr.mxu0 0.0
      %103 = vmatpush1.xpose.msra.mxu0 0.0
      %104 = vmatprep.subr.mxu0 0.0
      %105 = vmatpush1.xpose.msra.mxu0 0.0
      %106 = vmatprep.subr.mxu0 0.0
      %107 = vmatpush1.xpose.msra.mxu0 0.0
      %108 = vmatprep.subr.mxu0 0.0
      %109 = vmatpush1.xpose.msra.mxu0 0.0
      %110 = vmatprep.subr.mxu0 0.0
      %111 = vmatpush1.xpose.msra.mxu0 0.0
      %112 = vmatprep.subr.mxu0 0.0
      %113 = vmatpush1.xpose.msra.mxu0 0.0
      %114 = vmatprep.subr.mxu0 0.0
      %115 = vmatpush1.xpose.msra.mxu0 0.0
      %116 = vmatprep.subr.mxu0 0.0
      %117 = vmatpush1.xpose.msra.mxu0 0.0
      %118 = vmatprep.subr.mxu0 0.0
      %119 = vmatpush1.xpose.msra.mxu0 0.0
      %120 = vmatprep.subr.mxu0 0.0
      %121 = vmatpush1.xpose.msra.mxu0 0.0
      %122 = vmatprep.subr.mxu0 0.0
      %123 = vmatpush1.xpose.msra.mxu0 0.0
      %124 = vmatprep.subr.mxu0 0.0
      %125 = vmatpush1.xpose.msra.mxu0 0.0
      %126 = vmatprep.subr.mxu0 0.0
      %127 = vmatpush1.xpose.msra.mxu0 0.0
      %128 = vmatprep.subr.mxu0 0.0
      %129 = vmatpush1.xpose.msra.mxu0 0.0
      %130 = vmatprep.mubr.f32.mxu0 0.0
      %131 = vmatmul.mubr.f32.gmra.mrb[0].mxu0 %v58
      %v132 = vpop.f32.mrb[0].mxu0
      %v133 = vadd.f32 0.0, %v132
      %v134 = vpop.f32.mrb[0].mxu0
      %135 = vdwg.mxu0
      %v136 = vmul.f32 %v133, -2.0
      %138 = vset.pattern.permute.xlu0 0
      %139 = vperm.xlu0 %138, %v52
      %v140 = vpop.permute.xlu0 %139
      %v142 = vadd.f32 %v136, %v140
      %v144 = vlaneseq
      %v145 = vshrl.u32 %v144, 7
      %v146 = vsub.s32 0, %v145
      %v147 = vrot.slane %v50, %v146
      %v149 = vadd.f32 %v142, %v147
      %150 = vmatprep.subr.mxu0 0.0
      %151 = vmatpush1.xpose.msra.mxu0 %v58
      %152 = vmatprep.subr.mxu0 0.0
      %153 = vmatpush1.xpose.msra.mxu0 0.0
      %154 = vmatprep.subr.mxu0 0.0
      %155 = vmatpush1.xpose.msra.mxu0 0.0
      %156 = vmatprep.subr.mxu0 0.0
      %157 = vmatpush1.xpose.msra.mxu0 0.0
      %158 = vmatprep.subr.mxu0 0.0
      %159 = vmatpush1.xpose.msra.mxu0 0.0
      %160 = vmatprep.subr.mxu0 0.0
      %161 = vmatpush1.xpose.msra.mxu0 0.0
      %162 = vmatprep.subr.mxu0 0.0
      %163 = vmatpush1.xpose.msra.mxu0 0.0
      %164 = vmatprep.subr.mxu0 0.0
      %165 = vmatpush1.xpose.msra.mxu0 0.0
      %166 = vmatprep.subr.mxu0 0.0
      %167 = vmatpush1.xpose.msra.mxu0 0.0
      %168 = vmatprep.subr.mxu0 0.0
      %169 = vmatpush1.xpose.msra.mxu0 0.0
      %170 = vmatprep.subr.mxu0 0.0
      %171 = vmatpush1.xpose.msra.mxu0 0.0
      %172 = vmatprep.subr.mxu0 0.0
      %173 = vmatpush1.xpose.msra.mxu0 0.0
      %174 = vmatprep.subr.mxu0 0.0
      %175 = vmatpush1.xpose.msra.mxu0 0.0
      %176 = vmatprep.subr.mxu0 0.0
      %177 = vmatpush1.xpose.msra.mxu0 0.0
      %178 = vmatprep.subr.mxu0 0.0
      %179 = vmatpush1.xpose.msra.mxu0 0.0
      %180 = vmatprep.subr.mxu0 0.0
      %181 = vmatpush1.xpose.msra.mxu0 0.0
      %182 = vmatprep.subr.mxu0 0.0
      %183 = vmatpush1.xpose.msra.mxu0 0.0
      %184 = vmatprep.subr.mxu0 0.0
      %185 = vmatpush1.xpose.msra.mxu0 0.0
      %186 = vmatprep.subr.mxu0 0.0
      %187 = vmatpush1.xpose.msra.mxu0 0.0
      %188 = vmatprep.subr.mxu0 0.0
      %189 = vmatpush1.xpose.msra.mxu0 0.0
      %190 = vmatprep.subr.mxu0 0.0
      %191 = vmatpush1.xpose.msra.mxu0 0.0
      %192 = vmatprep.subr.mxu0 0.0
      %193 = vmatpush1.xpose.msra.mxu0 0.0
      %194 = vmatprep.subr.mxu0 0.0
      %195 = vmatpush1.xpose.msra.mxu0 0.0
      %196 = vmatprep.subr.mxu0 0.0
      %197 = vmatpush1.xpose.msra.mxu0 0.0
      %198 = vmatprep.subr.mxu0 0.0
      %199 = vmatpush1.xpose.msra.mxu0 0.0
      %200 = vmatprep.subr.mxu0 0.0
      %201 = vmatpush1.xpose.msra.mxu0 0.0
      %202 = vmatprep.subr.mxu0 0.0
      %203 = vmatpush1.xpose.msra.mxu0 0.0
      %204 = vmatprep.subr.mxu0 0.0
      %205 = vmatpush1.xpose.msra.mxu0 0.0
      %206 = vmatprep.subr.mxu0 0.0
      %207 = vmatpush1.xpose.msra.mxu0 0.0
      %208 = vmatprep.subr.mxu0 0.0
      %209 = vmatpush1.xpose.msra.mxu0 0.0
      %210 = vmatprep.subr.mxu0 0.0
      %211 = vmatpush1.xpose.msra.mxu0 0.0
      %212 = vmatprep.subr.mxu0 0.0
      %213 = vmatpush1.xpose.msra.mxu0 0.0
      %214 = vmatprep.mubr.f32.mxu0 0.0
      %215 = vmatmul.mubr.f32.gmra.mrb[0].mxu0 %v61
      %v216 = vpop.f32.mrb[0].mxu0
      %v217 = vadd.f32 0.0, %v216
      %v218 = vpop.f32.mrb[0].mxu0
      %219 = vmatprep.mubr.f32.mxu0 0.0
      %220 = vmatmul.mubr.f32.gmra.mrb[0].mxu0 %v64
      %v221 = vpop.f32.mrb[0].mxu0
      %v222 = vadd.f32 0.0, %v221
      %v223 = vpop.f32.mrb[0].mxu0
      %224 = vdwg.mxu0
      %s225 = sld [smem:[#allocation3 + %s43]]
      %v226 = vstv %s225
      %vm227 = vcmp.eq.s32.totalorder %v55, %v226
      %v228 = vsel %vm227, 1e+30, %v149
      %vm229 = vcmp.eq.s32.totalorder %v33, 0
      %v230 = vsel %vm229, 1, 0
      %vm231 = vcmp.eq.s32.totalorder %v230, 1
      %v232 = vsel %vm231, %v217, 0.0
      %v233 = vsel %vm231, %v222, 0.0
      %vm234 = vcmask 64512
      %v235 = vsel %vm234, %v232, 0.0
      %236 = vadd.xlane.f32.xlu0 %v235
      %v237 = vpop.xlane.xlu0 %236
      %v238 = vsel %vm234, %v233, 0.0
      %239 = vadd.xlane.f32.xlu0 %v238
      %v240 = vpop.xlane.xlu0 %239
      %v241 = vmul.f32 %v237, -2.0
      %v242 = vmul.f32 %v240, -2.0
      %v243 = vadd.f32 %v241, %v48
      %v244 = vadd.f32 %v242, %v49
      %v245 = vadd.f32 %v52, 1.0
      %v246 = vlaneseq
      %v247 = vshrl.u32 %v246, 7
      %v248 = vsub.s32 0, %v247
      %v249 = vrot.slane %v245, %v248
      %v250 = vadd.f32 %v243, %v249
      %v251 = vadd.f32 %v244, %v249
      %253 = vset.pattern.permute.xlu0 0
      %254 = vperm.xlu0 %253, %v250
      %v255 = vpop.permute.xlu0 %254
      %258 = vset.pattern.permute.xlu0 0
      %259 = vperm.xlu0 %258, %v251
      %v260 = vpop.permute.xlu0 %259
      %v263 = vlaneseq
      %v264 = vshrl.u32 %v263, 7
      %v265 = vsub.s32 0, %v264
      %v266 = vrot.slane %v228, %v265
      %v268 = vsub.f32 %v255, %v266
      %v269 = vsub.f32 %v260, %v266
      %vm270 = vcmp.gt.f32.partialorder %v268, 0.0
      %vm271 = vcmp.gt.f32.partialorder %v269, 0.0
      %vm272 = vcmp.lt.f32.partialorder %v268, 1.0
      %vm273 = vcmp.lt.f32.partialorder %v269, 1.0
      %vm274 = vmand %vm270, %vm272
      %vm275 = vmand %vm271, %vm273
      %v276 = vsel %vm274, %v268, 0.0
      %v277 = vsel %vm275, %v269, 0.0
      %vm278 = vcmask 130048
      %v279 = vsel %vm278, %v276, 0.0
      %280 = vadd.xlane.f32.xlu0 %v279
      %v281 = vpop.xlane.xlu0 %280
      %v282 = vsel %vm278, %v277, 0.0
      %283 = vadd.xlane.f32.xlu0 %v282
      %v284 = vpop.xlane.xlu0 %283
      %v285 = vsel %vm274, 1, 0
      %v286 = vsel %vm275, 1, 0
      %v287 = vsel %vm278, %v285, 0
      %v288 = vand.u32 %v287, 65535
      %v289 = vshrl.u32 %v287, 16
      %v290 = vcvt.s32.f32 %v288
      %v291 = vcvt.s32.f32 %v289
      %292 = vadd.xlane.f32.xlu0 %v290
      %v293 = vpop.xlane.xlu0 %292
      %294 = vadd.xlane.f32.xlu0 %v291
      %v295 = vpop.xlane.xlu0 %294
      %v296 = vcvt.f32.s32 %v293
      %v297 = vcvt.f32.s32 %v295
      %v298 = vshll.u32 %v297, 16
      %v299 = vadd.s32 %v298, %v296
      %v300 = vsel %vm278, %v286, 0
      %v301 = vand.u32 %v300, 65535
      %v302 = vshrl.u32 %v300, 16
      %v303 = vcvt.s32.f32 %v301
      %v304 = vcvt.s32.f32 %v302
      %305 = vadd.xlane.f32.xlu0 %v303
      %v306 = vpop.xlane.xlu0 %305
      %307 = vadd.xlane.f32.xlu0 %v304
      %v308 = vpop.xlane.xlu0 %307
      %v309 = vcvt.f32.s32 %v306
      %v310 = vcvt.f32.s32 %v308
      %v311 = vshll.u32 %v310, 16
      %v312 = vadd.s32 %v311, %v309
      %vm313 = vcmp.eq.s32.totalorder %v53, %v226
      %vm314 = vcmp.eq.s32.totalorder %v54, %v226
      %v315 = vsel %vm313, %v281, 0.0
      %v316 = vsel %vm314, %v284, 0.0
      %vm317 = vcmask 7168
      %v318 = vsel %vm317, %v315, 0.0
      %v319 = vsel %vm317, %v316, 0.0
      %v320 = vadd.f32 %v318, %v319
      %321 = vadd.xlane.f32.xlu0 %v320
      %v322 = vpop.xlane.xlu0 %321
      %v323 = vrot.slane %v322, 4
      %v324 = vadd.f32 %v322, %v323
      %v325 = vrot.slane %v324, 2
      %v326 = vadd.f32 %v324, %v325
      %v327 = vrot.slane %v326, 1
      %v328 = vadd.f32 %v326, %v327
      %s329 = vtos %v328
      %v330 = vstv %s329
      %v331 = vadd.f32 %v40, %v330
      %v332 = vsel %vm313, %v299, 0
      %v333 = vsel %vm314, %v312, 0
      %v334 = vsel %vm317, %v332, 0
      %v335 = vsel %vm317, %v333, 0
      %v336 = vadd.s32 %v334, %v335
      %v337 = vand.u32 %v336, 65535
      %v338 = vshrl.u32 %v336, 16
      %v339 = vcvt.s32.f32 %v337
      %v340 = vcvt.s32.f32 %v338
      %341 = vadd.xlane.f32.xlu0 %v339
      %v342 = vpop.xlane.xlu0 %341
      %343 = vadd.xlane.f32.xlu0 %v340
      %v344 = vpop.xlane.xlu0 %343
      %v345 = vcvt.f32.s32 %v342
      %v346 = vcvt.f32.s32 %v344
      %v347 = vshll.u32 %v346, 16
      %v348 = vadd.s32 %v347, %v345
      %v349 = vrot.slane %v348, 4
      %v350 = vadd.s32 %v348, %v349
      %v351 = vrot.slane %v350, 2
      %v352 = vadd.s32 %v350, %v351
      %v353 = vrot.slane %v352, 1
      %v354 = vadd.s32 %v352, %v353
      %s355 = vtos %v354
      %v356 = vstv %s355
      %v357 = vadd.s32 %v41, %v356
      %s358 = sadd.s32 %s43, 1
      %s359 = sld [smem:[#allocation3 + %s358]]
      %v360 = vstv %s359
      %vm361 = vcmp.eq.s32.totalorder %v55, %v360
      %v364 = vunpack.c.l.s4 1966171168
      %v365 = vunpack.c.0.s8 %v364
      %v366 = vlaneseq
      %v367 = vshrl.u32 %v366, 7
      %v368 = vsub.s32 %v365, %v367
      %v369 = vrot.slane %v149, %v368
      %v370 = vcombine.high %v369, %v369
      %v372 = vunpack.c.l.s4 1966171168
      %v373 = vunpack.c.0.s8 %v372
      %v374 = vlaneseq
      %v375 = vshrl.u32 %v374, 7
      %v376 = vsub.s32 %v373, %v375
      %v377 = vrot.slane %v369, %v376
      %v379 = vunpack.c.l.s4 1966171168
      %v380 = vunpack.c.0.s8 %v379
      %v381 = vlaneseq
      %v382 = vshrl.u32 %v381, 7
      %v383 = vsub.s32 %v380, %v382
      %v384 = vrot.slane %v370, %v383
      %v386 = vsel %vm361, 1e+30, %v384
      %vm387 = vcmp.eq.s32.totalorder %v33, 1
      %v388 = vsel %vm387, 1, 0
      %vm389 = vcmp.eq.s32.totalorder %v388, 1
      %v390 = vsel %vm389, %v217, 0.0
      %v391 = vsel %vm389, %v222, 0.0
      %v392 = vsel %vm234, %v390, 0.0
      %393 = vadd.xlane.f32.xlu0 %v392
      %v394 = vpop.xlane.xlu0 %393
      %v395 = vsel %vm234, %v391, 0.0
      %396 = vadd.xlane.f32.xlu0 %v395
      %v397 = vpop.xlane.xlu0 %396
      %v398 = vmul.f32 %v394, -2.0
      %v399 = vmul.f32 %v397, -2.0
      %v400 = vadd.f32 %v398, %v48
      %v401 = vadd.f32 %v399, %v49
      %v402 = vlaneseq
      %v403 = vshrl.u32 %v402, 7
      %v404 = vsub.s32 1, %v403
      %v405 = vrot.slane %v245, %v404
      %v406 = vadd.f32 %v400, %v405
      %v407 = vadd.f32 %v401, %v405
      %409 = vset.pattern.permute.xlu0 0
      %410 = vperm.xlu0 %409, %v406
      %v411 = vpop.permute.xlu0 %410
      %414 = vset.pattern.permute.xlu0 0
      %415 = vperm.xlu0 %414, %v407
      %v416 = vpop.permute.xlu0 %415
      %v419 = vlaneseq
      %v420 = vshrl.u32 %v419, 7
      %v421 = vsub.s32 0, %v420
      %v422 = vrot.slane %v386, %v421
      %v424 = vsub.f32 %v411, %v422
      %v425 = vsub.f32 %v416, %v422
      %vm426 = vcmp.gt.f32.partialorder %v424, 0.0
      %vm427 = vcmp.gt.f32.partialorder %v425, 0.0
      %vm428 = vcmp.lt.f32.partialorder %v424, 1.0
      %vm429 = vcmp.lt.f32.partialorder %v425, 1.0
      %vm430 = vmand %vm426, %vm428
      %vm431 = vmand %vm427, %vm429
      %v432 = vsel %vm430, %v424, 0.0
      %v433 = vsel %vm431, %v425, 0.0
      %v434 = vsel %vm278, %v432, 0.0
      %435 = vadd.xlane.f32.xlu0 %v434
      %v436 = vpop.xlane.xlu0 %435
      %v437 = vsel %vm278, %v433, 0.0
      %438 = vadd.xlane.f32.xlu0 %v437
      %v439 = vpop.xlane.xlu0 %438
      %v440 = vsel %vm430, 1, 0
      %v441 = vsel %vm431, 1, 0
      %v442 = vsel %vm278, %v440, 0
      %v443 = vand.u32 %v442, 65535
      %v444 = vshrl.u32 %v442, 16
      %v445 = vcvt.s32.f32 %v443
      %v446 = vcvt.s32.f32 %v444
      %447 = vadd.xlane.f32.xlu0 %v445
      %v448 = vpop.xlane.xlu0 %447
      %449 = vadd.xlane.f32.xlu0 %v446
      %v450 = vpop.xlane.xlu0 %449
      %v451 = vcvt.f32.s32 %v448
      %v452 = vcvt.f32.s32 %v450
      %v453 = vshll.u32 %v452, 16
      %v454 = vadd.s32 %v453, %v451
      %v455 = vsel %vm278, %v441, 0
      %v456 = vand.u32 %v455, 65535
      %v457 = vshrl.u32 %v455, 16
      %v458 = vcvt.s32.f32 %v456
      %v459 = vcvt.s32.f32 %v457
      %460 = vadd.xlane.f32.xlu0 %v458
      %v461 = vpop.xlane.xlu0 %460
      %462 = vadd.xlane.f32.xlu0 %v459
      %v463 = vpop.xlane.xlu0 %462
      %v464 = vcvt.f32.s32 %v461
      %v465 = vcvt.f32.s32 %v463
      %v466 = vshll.u32 %v465, 16
      %v467 = vadd.s32 %v466, %v464
      %vm468 = vcmp.eq.s32.totalorder %v53, %v360
      %vm469 = vcmp.eq.s32.totalorder %v54, %v360
      %v470 = vsel %vm468, %v436, 0.0
      %v471 = vsel %vm469, %v439, 0.0
      %v472 = vsel %vm317, %v470, 0.0
      %v473 = vsel %vm317, %v471, 0.0
      %v474 = vadd.f32 %v472, %v473
      %475 = vadd.xlane.f32.xlu0 %v474
      %v476 = vpop.xlane.xlu0 %475
      %v477 = vrot.slane %v476, 4
      %v478 = vadd.f32 %v476, %v477
      %v479 = vrot.slane %v478, 2
      %v480 = vadd.f32 %v478, %v479
      %v481 = vrot.slane %v480, 1
      %v482 = vadd.f32 %v480, %v481
      %s483 = vtos %v482
      %v484 = vstv %s483
      %v485 = vadd.f32 %v331, %v484
      %v486 = vsel %vm468, %v454, 0
      %v487 = vsel %vm469, %v467, 0
      %v488 = vsel %vm317, %v486, 0
      %v489 = vsel %vm317, %v487, 0
      %v490 = vadd.s32 %v488, %v489
      %v491 = vand.u32 %v490, 65535
      %v492 = vshrl.u32 %v490, 16
      %v493 = vcvt.s32.f32 %v491
      %v494 = vcvt.s32.f32 %v492
      %495 = vadd.xlane.f32.xlu0 %v493
      %v496 = vpop.xlane.xlu0 %495
      %497 = vadd.xlane.f32.xlu0 %v494
      %v498 = vpop.xlane.xlu0 %497
      %v499 = vcvt.f32.s32 %v496
      %v500 = vcvt.f32.s32 %v498
      %v501 = vshll.u32 %v500, 16
      %v502 = vadd.s32 %v501, %v499
      %v503 = vrot.slane %v502, 4
      %v504 = vadd.s32 %v502, %v503
      %v505 = vrot.slane %v504, 2
      %v506 = vadd.s32 %v504, %v505
      %v507 = vrot.slane %v506, 1
      %v508 = vadd.s32 %v506, %v507
      %s509 = vtos %v508
      %v510 = vstv %s509
      %v511 = vadd.s32 %v357, %v510
      %s512 = sadd.s32 %s43, 2
      %s513 = sld [smem:[#allocation3 + %s512]]
      %v514 = vstv %s513
      %vm515 = vcmp.eq.s32.totalorder %v55, %v514
      %v516 = vcombine.high %v377, %v377
      %v518 = vsel %vm515, 1e+30, %v516
      %vm519 = vcmp.eq.s32.totalorder %v33, 2
      %v520 = vsel %vm519, 1, 0
      %vm521 = vcmp.eq.s32.totalorder %v520, 1
      %v522 = vsel %vm521, %v217, 0.0
      %v523 = vsel %vm521, %v222, 0.0
      %v524 = vsel %vm234, %v522, 0.0
      %525 = vadd.xlane.f32.xlu0 %v524
      %v526 = vpop.xlane.xlu0 %525
      %v527 = vsel %vm234, %v523, 0.0
      %528 = vadd.xlane.f32.xlu0 %v527
      %v529 = vpop.xlane.xlu0 %528
      %v530 = vmul.f32 %v526, -2.0
      %v531 = vmul.f32 %v529, -2.0
      %v532 = vadd.f32 %v530, %v48
      %v533 = vadd.f32 %v531, %v49
      %v534 = vlaneseq
      %v535 = vshrl.u32 %v534, 7
      %v536 = vsub.s32 2, %v535
      %v537 = vrot.slane %v245, %v536
      %v538 = vadd.f32 %v532, %v537
      %v539 = vadd.f32 %v533, %v537
      %541 = vset.pattern.permute.xlu0 0
      %542 = vperm.xlu0 %541, %v538
      %v543 = vpop.permute.xlu0 %542
      %546 = vset.pattern.permute.xlu0 0
      %547 = vperm.xlu0 %546, %v539
      %v548 = vpop.permute.xlu0 %547
      %v551 = vlaneseq
      %v552 = vshrl.u32 %v551, 7
      %v553 = vsub.s32 0, %v552
      %v554 = vrot.slane %v518, %v553
      %v556 = vsub.f32 %v543, %v554
      %v557 = vsub.f32 %v548, %v554
      %vm558 = vcmp.gt.f32.partialorder %v556, 0.0
      %vm559 = vcmp.gt.f32.partialorder %v557, 0.0
      %vm560 = vcmp.lt.f32.partialorder %v556, 1.0
      %vm561 = vcmp.lt.f32.partialorder %v557, 1.0
      %vm562 = vmand %vm558, %vm560
      %vm563 = vmand %vm559, %vm561
      %v564 = vsel %vm562, %v556, 0.0
      %v565 = vsel %vm563, %v557, 0.0
      %v566 = vsel %vm278, %v564, 0.0
      %567 = vadd.xlane.f32.xlu0 %v566
      %v568 = vpop.xlane.xlu0 %567
      %v569 = vsel %vm278, %v565, 0.0
      %570 = vadd.xlane.f32.xlu0 %v569
      %v571 = vpop.xlane.xlu0 %570
      %v572 = vsel %vm562, 1, 0
      %v573 = vsel %vm563, 1, 0
      %v574 = vsel %vm278, %v572, 0
      %v575 = vand.u32 %v574, 65535
      %v576 = vshrl.u32 %v574, 16
      %v577 = vcvt.s32.f32 %v575
      %v578 = vcvt.s32.f32 %v576
      %579 = vadd.xlane.f32.xlu0 %v577
      %v580 = vpop.xlane.xlu0 %579
      %581 = vadd.xlane.f32.xlu0 %v578
      %v582 = vpop.xlane.xlu0 %581
      %v583 = vcvt.f32.s32 %v580
      %v584 = vcvt.f32.s32 %v582
      %v585 = vshll.u32 %v584, 16
      %v586 = vadd.s32 %v585, %v583
      %v587 = vsel %vm278, %v573, 0
      %v588 = vand.u32 %v587, 65535
      %v589 = vshrl.u32 %v587, 16
      %v590 = vcvt.s32.f32 %v588
      %v591 = vcvt.s32.f32 %v589
      %592 = vadd.xlane.f32.xlu0 %v590
      %v593 = vpop.xlane.xlu0 %592
      %594 = vadd.xlane.f32.xlu0 %v591
      %v595 = vpop.xlane.xlu0 %594
      %v596 = vcvt.f32.s32 %v593
      %v597 = vcvt.f32.s32 %v595
      %v598 = vshll.u32 %v597, 16
      %v599 = vadd.s32 %v598, %v596
      %vm600 = vcmp.eq.s32.totalorder %v53, %v514
      %vm601 = vcmp.eq.s32.totalorder %v54, %v514
      %v602 = vsel %vm600, %v568, 0.0
      %v603 = vsel %vm601, %v571, 0.0
      %v604 = vsel %vm317, %v602, 0.0
      %v605 = vsel %vm317, %v603, 0.0
      %v606 = vadd.f32 %v604, %v605
      %607 = vadd.xlane.f32.xlu0 %v606
      %v608 = vpop.xlane.xlu0 %607
      %v609 = vrot.slane %v608, 4
      %v610 = vadd.f32 %v608, %v609
      %v611 = vrot.slane %v610, 2
      %v612 = vadd.f32 %v610, %v611
      %v613 = vrot.slane %v612, 1
      %v614 = vadd.f32 %v612, %v613
      %s615 = vtos %v614
      %v616 = vstv %s615
      %v617 = vadd.f32 %v485, %v616
      %v618 = vsel %vm600, %v586, 0
      %v619 = vsel %vm601, %v599, 0
      %v620 = vsel %vm317, %v618, 0
      %v621 = vsel %vm317, %v619, 0
      %v622 = vadd.s32 %v620, %v621
      %v623 = vand.u32 %v622, 65535
      %v624 = vshrl.u32 %v622, 16
      %v625 = vcvt.s32.f32 %v623
      %v626 = vcvt.s32.f32 %v624
      %627 = vadd.xlane.f32.xlu0 %v625
      %v628 = vpop.xlane.xlu0 %627
      %629 = vadd.xlane.f32.xlu0 %v626
      %v630 = vpop.xlane.xlu0 %629
      %v631 = vcvt.f32.s32 %v628
      %v632 = vcvt.f32.s32 %v630
      %v633 = vshll.u32 %v632, 16
      %v634 = vadd.s32 %v633, %v631
      %v635 = vrot.slane %v634, 4
      %v636 = vadd.s32 %v634, %v635
      %v637 = vrot.slane %v636, 2
      %v638 = vadd.s32 %v636, %v637
      %v639 = vrot.slane %v638, 1
      %v640 = vadd.s32 %v638, %v639
      %s641 = vtos %v640
      %v642 = vstv %s641
      %v643 = vadd.s32 %v511, %v642
      %s644 = sadd.s32 %s43, 3
      %s645 = sld [smem:[#allocation3 + %s644]]
      %v646 = vstv %s645
      %vm647 = vcmp.eq.s32.totalorder %v55, %v646
      %v648 = vcombine.high %v384, %v384
      %v650 = vsel %vm647, 1e+30, %v648
      %vm651 = vcmp.eq.s32.totalorder %v33, 3
      %v652 = vsel %vm651, 1, 0
      %vm653 = vcmp.eq.s32.totalorder %v652, 1
      %v654 = vsel %vm653, %v217, 0.0
      %v655 = vsel %vm653, %v222, 0.0
      %v656 = vsel %vm234, %v654, 0.0
      %657 = vadd.xlane.f32.xlu0 %v656
      %v658 = vpop.xlane.xlu0 %657
      %v659 = vsel %vm234, %v655, 0.0
      %660 = vadd.xlane.f32.xlu0 %v659
      %v661 = vpop.xlane.xlu0 %660
      %v662 = vmul.f32 %v658, -2.0
      %v663 = vmul.f32 %v661, -2.0
      %v664 = vadd.f32 %v662, %v48
      %v665 = vadd.f32 %v663, %v49
      %v666 = vlaneseq
      %v667 = vshrl.u32 %v666, 7
      %v668 = vsub.s32 3, %v667
      %v669 = vrot.slane %v245, %v668
      %v670 = vadd.f32 %v664, %v669
      %v671 = vadd.f32 %v665, %v669
      %673 = vset.pattern.permute.xlu0 0
      %674 = vperm.xlu0 %673, %v670
      %v675 = vpop.permute.xlu0 %674
      %678 = vset.pattern.permute.xlu0 0
      %679 = vperm.xlu0 %678, %v671
      %v680 = vpop.permute.xlu0 %679
      %v683 = vlaneseq
      %v684 = vshrl.u32 %v683, 7
      %v685 = vsub.s32 0, %v684
      %v686 = vrot.slane %v650, %v685
      %v688 = vsub.f32 %v675, %v686
      %v689 = vsub.f32 %v680, %v686
      %vm690 = vcmp.gt.f32.partialorder %v688, 0.0
      %vm691 = vcmp.gt.f32.partialorder %v689, 0.0
      %vm692 = vcmp.lt.f32.partialorder %v688, 1.0
      %vm693 = vcmp.lt.f32.partialorder %v689, 1.0
      %vm694 = vmand %vm690, %vm692
      %vm695 = vmand %vm691, %vm693
      %v696 = vsel %vm694, %v688, 0.0
      %v697 = vsel %vm695, %v689, 0.0
      %v698 = vsel %vm278, %v696, 0.0
      %699 = vadd.xlane.f32.xlu0 %v698
      %v700 = vpop.xlane.xlu0 %699
      %v701 = vsel %vm278, %v697, 0.0
      %702 = vadd.xlane.f32.xlu0 %v701
      %v703 = vpop.xlane.xlu0 %702
      %v704 = vsel %vm694, 1, 0
      %v705 = vsel %vm695, 1, 0
      %v706 = vsel %vm278, %v704, 0
      %v707 = vand.u32 %v706, 65535
      %v708 = vshrl.u32 %v706, 16
      %v709 = vcvt.s32.f32 %v707
      %v710 = vcvt.s32.f32 %v708
      %711 = vadd.xlane.f32.xlu0 %v709
      %v712 = vpop.xlane.xlu0 %711
      %713 = vadd.xlane.f32.xlu0 %v710
      %v714 = vpop.xlane.xlu0 %713
      %v715 = vcvt.f32.s32 %v712
      %v716 = vcvt.f32.s32 %v714
      %v717 = vshll.u32 %v716, 16
      %v718 = vadd.s32 %v717, %v715
      %v719 = vsel %vm278, %v705, 0
      %v720 = vand.u32 %v719, 65535
      %v721 = vshrl.u32 %v719, 16
      %v722 = vcvt.s32.f32 %v720
      %v723 = vcvt.s32.f32 %v721
      %724 = vadd.xlane.f32.xlu0 %v722
      %v725 = vpop.xlane.xlu0 %724
      %726 = vadd.xlane.f32.xlu0 %v723
      %v727 = vpop.xlane.xlu0 %726
      %v728 = vcvt.f32.s32 %v725
      %v729 = vcvt.f32.s32 %v727
      %v730 = vshll.u32 %v729, 16
      %v731 = vadd.s32 %v730, %v728
      %vm732 = vcmp.eq.s32.totalorder %v53, %v646
      %vm733 = vcmp.eq.s32.totalorder %v54, %v646
      %v734 = vsel %vm732, %v700, 0.0
      %v735 = vsel %vm733, %v703, 0.0
      %v736 = vsel %vm317, %v734, 0.0
      %v737 = vsel %vm317, %v735, 0.0
      %v738 = vadd.f32 %v736, %v737
      %739 = vadd.xlane.f32.xlu0 %v738
      %v740 = vpop.xlane.xlu0 %739
      %v741 = vrot.slane %v740, 4
      %v742 = vadd.f32 %v740, %v741
      %v743 = vrot.slane %v742, 2
      %v744 = vadd.f32 %v742, %v743
      %v745 = vrot.slane %v744, 1
      %v746 = vadd.f32 %v744, %v745
      %s747 = vtos %v746
      %v748 = vstv %s747
      %v749 = vadd.f32 %v617, %v748
      %v750 = vsel %vm732, %v718, 0
      %v751 = vsel %vm733, %v731, 0
      %v752 = vsel %vm317, %v750, 0
      %v753 = vsel %vm317, %v751, 0
      %v754 = vadd.s32 %v752, %v753
      %v755 = vand.u32 %v754, 65535
      %v756 = vshrl.u32 %v754, 16
      %v757 = vcvt.s32.f32 %v755
      %v758 = vcvt.s32.f32 %v756
      %759 = vadd.xlane.f32.xlu0 %v757
      %v760 = vpop.xlane.xlu0 %759
      %761 = vadd.xlane.f32.xlu0 %v758
      %v762 = vpop.xlane.xlu0 %761
      %v763 = vcvt.f32.s32 %v760
      %v764 = vcvt.f32.s32 %v762
      %v765 = vshll.u32 %v764, 16
      %v766 = vadd.s32 %v765, %v763
      %v767 = vrot.slane %v766, 4
      %v768 = vadd.s32 %v766, %v767
      %v769 = vrot.slane %v768, 2
      %v770 = vadd.s32 %v768, %v769
      %v771 = vrot.slane %v770, 1
      %v772 = vadd.s32 %v770, %v771
      %s773 = vtos %v772
      %v774 = vstv %s773
      %v775 = vadd.s32 %v643, %v774
      %s776 = sadd.s32 %s43, 4
      %s777 = sld [smem:[#allocation3 + %s776]]
      %v778 = vstv %s777
      %vm779 = vcmp.eq.s32.totalorder %v55, %v778
      %v780 = vcombine.high %v149, %v149
      %v782 = vunpack.c.l.s4 1966171168
      %v783 = vunpack.c.0.s8 %v782
      %v784 = vlaneseq
      %v785 = vshrl.u32 %v784, 7
      %v786 = vsub.s32 %v783, %v785
      %v787 = vrot.slane %v780, %v786
      %v789 = vunpack.c.l.s4 1966171168
      %v790 = vunpack.c.0.s8 %v789
      %v791 = vlaneseq
      %v792 = vshrl.u32 %v791, 7
      %v793 = vsub.s32 %v790, %v792
      %v794 = vrot.slane %v787, %v793
      %v796 = vsel %vm779, 1e+30, %v794
      %vm797 = vcmp.eq.s32.totalorder %v33, 4
      %v798 = vsel %vm797, 1, 0
      %vm799 = vcmp.eq.s32.totalorder %v798, 1
      %v800 = vsel %vm799, %v217, 0.0
      %v801 = vsel %vm799, %v222, 0.0
      %v802 = vsel %vm234, %v800, 0.0
      %803 = vadd.xlane.f32.xlu0 %v802
      %v804 = vpop.xlane.xlu0 %803
      %v805 = vsel %vm234, %v801, 0.0
      %806 = vadd.xlane.f32.xlu0 %v805
      %v807 = vpop.xlane.xlu0 %806
      %v808 = vmul.f32 %v804, -2.0
      %v809 = vmul.f32 %v807, -2.0
      %v810 = vadd.f32 %v808, %v48
      %v811 = vadd.f32 %v809, %v49
      %v812 = vlaneseq
      %v813 = vshrl.u32 %v812, 7
      %v814 = vsub.s32 4, %v813
      %v815 = vrot.slane %v245, %v814
      %v816 = vadd.f32 %v810, %v815
      %v817 = vadd.f32 %v811, %v815
      %819 = vset.pattern.permute.xlu0 0
      %820 = vperm.xlu0 %819, %v816
      %v821 = vpop.permute.xlu0 %820
      %824 = vset.pattern.permute.xlu0 0
      %825 = vperm.xlu0 %824, %v817
      %v826 = vpop.permute.xlu0 %825
      %v829 = vlaneseq
      %v830 = vshrl.u32 %v829, 7
      %v831 = vsub.s32 0, %v830
      %v832 = vrot.slane %v796, %v831
      %v834 = vsub.f32 %v821, %v832
      %v835 = vsub.f32 %v826, %v832
      %vm836 = vcmp.gt.f32.partialorder %v834, 0.0
      %vm837 = vcmp.gt.f32.partialorder %v835, 0.0
      %vm838 = vcmp.lt.f32.partialorder %v834, 1.0
      %vm839 = vcmp.lt.f32.partialorder %v835, 1.0
      %vm840 = vmand %vm836, %vm838
      %vm841 = vmand %vm837, %vm839
      %v842 = vsel %vm840, %v834, 0.0
      %v843 = vsel %vm841, %v835, 0.0
      %v844 = vsel %vm278, %v842, 0.0
      %845 = vadd.xlane.f32.xlu0 %v844
      %v846 = vpop.xlane.xlu0 %845
      %v847 = vsel %vm278, %v843, 0.0
      %848 = vadd.xlane.f32.xlu0 %v847
      %v849 = vpop.xlane.xlu0 %848
      %v850 = vsel %vm840, 1, 0
      %v851 = vsel %vm841, 1, 0
      %v852 = vsel %vm278, %v850, 0
      %v853 = vand.u32 %v852, 65535
      %v854 = vshrl.u32 %v852, 16
      %v855 = vcvt.s32.f32 %v853
      %v856 = vcvt.s32.f32 %v854
      %857 = vadd.xlane.f32.xlu0 %v855
      %v858 = vpop.xlane.xlu0 %857
      %859 = vadd.xlane.f32.xlu0 %v856
      %v860 = vpop.xlane.xlu0 %859
      %v861 = vcvt.f32.s32 %v858
      %v862 = vcvt.f32.s32 %v860
      %v863 = vshll.u32 %v862, 16
      %v864 = vadd.s32 %v863, %v861
      %v865 = vsel %vm278, %v851, 0
      %v866 = vand.u32 %v865, 65535
      %v867 = vshrl.u32 %v865, 16
      %v868 = vcvt.s32.f32 %v866
      %v869 = vcvt.s32.f32 %v867
      %870 = vadd.xlane.f32.xlu0 %v868
      %v871 = vpop.xlane.xlu0 %870
      %872 = vadd.xlane.f32.xlu0 %v869
      %v873 = vpop.xlane.xlu0 %872
      %v874 = vcvt.f32.s32 %v871
      %v875 = vcvt.f32.s32 %v873
      %v876 = vshll.u32 %v875, 16
      %v877 = vadd.s32 %v876, %v874
      %vm878 = vcmp.eq.s32.totalorder %v53, %v778
      %vm879 = vcmp.eq.s32.totalorder %v54, %v778
      %v880 = vsel %vm878, %v846, 0.0
      %v881 = vsel %vm879, %v849, 0.0
      %v882 = vsel %vm317, %v880, 0.0
      %v883 = vsel %vm317, %v881, 0.0
      %v884 = vadd.f32 %v882, %v883
      %885 = vadd.xlane.f32.xlu0 %v884
      %v886 = vpop.xlane.xlu0 %885
      %v887 = vrot.slane %v886, 4
      %v888 = vadd.f32 %v886, %v887
      %v889 = vrot.slane %v888, 2
      %v890 = vadd.f32 %v888, %v889
      %v891 = vrot.slane %v890, 1
      %v892 = vadd.f32 %v890, %v891
      %s893 = vtos %v892
      %v894 = vstv %s893
      %v895 = vadd.f32 %v749, %v894
      %v896 = vsel %vm878, %v864, 0
      %v897 = vsel %vm879, %v877, 0
      %v898 = vsel %vm317, %v896, 0
      %v899 = vsel %vm317, %v897, 0
      %v900 = vadd.s32 %v898, %v899
      %v901 = vand.u32 %v900, 65535
      %v902 = vshrl.u32 %v900, 16
      %v903 = vcvt.s32.f32 %v901
      %v904 = vcvt.s32.f32 %v902
      %905 = vadd.xlane.f32.xlu0 %v903
      %v906 = vpop.xlane.xlu0 %905
      %907 = vadd.xlane.f32.xlu0 %v904
      %v908 = vpop.xlane.xlu0 %907
      %v909 = vcvt.f32.s32 %v906
      %v910 = vcvt.f32.s32 %v908
      %v911 = vshll.u32 %v910, 16
      %v912 = vadd.s32 %v911, %v909
      %v913 = vrot.slane %v912, 4
      %v914 = vadd.s32 %v912, %v913
      %v915 = vrot.slane %v914, 2
      %v916 = vadd.s32 %v914, %v915
      %v917 = vrot.slane %v916, 1
      %v918 = vadd.s32 %v916, %v917
      %s919 = vtos %v918
      %v920 = vstv %s919
      %v921 = vadd.s32 %v775, %v920
      %s922 = sadd.s32 %s43, 5
      %s923 = sld [smem:[#allocation3 + %s922]]
      %v924 = vstv %s923
      %vm925 = vcmp.eq.s32.totalorder %v55, %v924
      %v926 = vcombine.high %v787, %v787
      %v928 = vunpack.c.l.s4 1966171168
      %v929 = vunpack.c.0.s8 %v928
      %v930 = vlaneseq
      %v931 = vshrl.u32 %v930, 7
      %v932 = vsub.s32 %v929, %v931
      %v933 = vrot.slane %v926, %v932
      %v935 = vsel %vm925, 1e+30, %v933
      %vm936 = vcmp.eq.s32.totalorder %v33, 5
      %v937 = vsel %vm936, 1, 0
      %vm938 = vcmp.eq.s32.totalorder %v937, 1
      %v939 = vsel %vm938, %v217, 0.0
      %v940 = vsel %vm938, %v222, 0.0
      %v941 = vsel %vm234, %v939, 0.0
      %942 = vadd.xlane.f32.xlu0 %v941
      %v943 = vpop.xlane.xlu0 %942
      %v944 = vsel %vm234, %v940, 0.0
      %945 = vadd.xlane.f32.xlu0 %v944
      %v946 = vpop.xlane.xlu0 %945
      %v947 = vmul.f32 %v943, -2.0
      %v948 = vmul.f32 %v946, -2.0
      %v949 = vadd.f32 %v947, %v48
      %v950 = vadd.f32 %v948, %v49
      %v951 = vlaneseq
      %v952 = vshrl.u32 %v951, 7
      %v953 = vsub.s32 5, %v952
      %v954 = vrot.slane %v245, %v953
      %v955 = vadd.f32 %v949, %v954
      %v956 = vadd.f32 %v950, %v954
      %958 = vset.pattern.permute.xlu0 0
      %959 = vperm.xlu0 %958, %v955
      %v960 = vpop.permute.xlu0 %959
      %963 = vset.pattern.permute.xlu0 0
      %964 = vperm.xlu0 %963, %v956
      %v965 = vpop.permute.xlu0 %964
      %v968 = vlaneseq
      %v969 = vshrl.u32 %v968, 7
      %v970 = vsub.s32 0, %v969
      %v971 = vrot.slane %v935, %v970
      %v973 = vsub.f32 %v960, %v971
      %v974 = vsub.f32 %v965, %v971
      %vm975 = vcmp.gt.f32.partialorder %v973, 0.0
      %vm976 = vcmp.gt.f32.partialorder %v974, 0.0
      %vm977 = vcmp.lt.f32.partialorder %v973, 1.0
      %vm978 = vcmp.lt.f32.partialorder %v974, 1.0
      %vm979 = vmand %vm975, %vm977
      %vm980 = vmand %vm976, %vm978
      %v981 = vsel %vm979, %v973, 0.0
      %v982 = vsel %vm980, %v974, 0.0
      %v983 = vsel %vm278, %v981, 0.0
      %984 = vadd.xlane.f32.xlu0 %v983
      %v985 = vpop.xlane.xlu0 %984
      %v986 = vsel %vm278, %v982, 0.0
      %987 = vadd.xlane.f32.xlu0 %v986
      %v988 = vpop.xlane.xlu0 %987
      %v989 = vsel %vm979, 1, 0
      %v990 = vsel %vm980, 1, 0
      %v991 = vsel %vm278, %v989, 0
      %v992 = vand.u32 %v991, 65535
      %v993 = vshrl.u32 %v991, 16
      %v994 = vcvt.s32.f32 %v992
      %v995 = vcvt.s32.f32 %v993
      %996 = vadd.xlane.f32.xlu0 %v994
      %v997 = vpop.xlane.xlu0 %996
      %998 = vadd.xlane.f32.xlu0 %v995
      %v999 = vpop.xlane.xlu0 %998
      %v1000 = vcvt.f32.s32 %v997
      %v1001 = vcvt.f32.s32 %v999
      %v1002 = vshll.u32 %v1001, 16
      %v1003 = vadd.s32 %v1002, %v1000
      %v1004 = vsel %vm278, %v990, 0
      %v1005 = vand.u32 %v1004, 65535
      %v1006 = vshrl.u32 %v1004, 16
      %v1007 = vcvt.s32.f32 %v1005
      %v1008 = vcvt.s32.f32 %v1006
      %1009 = vadd.xlane.f32.xlu0 %v1007
      %v1010 = vpop.xlane.xlu0 %1009
      %1011 = vadd.xlane.f32.xlu0 %v1008
      %v1012 = vpop.xlane.xlu0 %1011
      %v1013 = vcvt.f32.s32 %v1010
      %v1014 = vcvt.f32.s32 %v1012
      %v1015 = vshll.u32 %v1014, 16
      %v1016 = vadd.s32 %v1015, %v1013
      %vm1017 = vcmp.eq.s32.totalorder %v53, %v924
      %vm1018 = vcmp.eq.s32.totalorder %v54, %v924
      %v1019 = vsel %vm1017, %v985, 0.0
      %v1020 = vsel %vm1018, %v988, 0.0
      %v1021 = vsel %vm317, %v1019, 0.0
      %v1022 = vsel %vm317, %v1020, 0.0
      %v1023 = vadd.f32 %v1021, %v1022
      %1024 = vadd.xlane.f32.xlu0 %v1023
      %v1025 = vpop.xlane.xlu0 %1024
      %v1026 = vrot.slane %v1025, 4
      %v1027 = vadd.f32 %v1025, %v1026
      %v1028 = vrot.slane %v1027, 2
      %v1029 = vadd.f32 %v1027, %v1028
      %v1030 = vrot.slane %v1029, 1
      %v1031 = vadd.f32 %v1029, %v1030
      %s1032 = vtos %v1031
      %v1033 = vstv %s1032
      %v1034 = vadd.f32 %v895, %v1033
      %v1035 = vsel %vm1017, %v1003, 0
      %v1036 = vsel %vm1018, %v1016, 0
      %v1037 = vsel %vm317, %v1035, 0
      %v1038 = vsel %vm317, %v1036, 0
      %v1039 = vadd.s32 %v1037, %v1038
      %v1040 = vand.u32 %v1039, 65535
      %v1041 = vshrl.u32 %v1039, 16
      %v1042 = vcvt.s32.f32 %v1040
      %v1043 = vcvt.s32.f32 %v1041
      %1044 = vadd.xlane.f32.xlu0 %v1042
      %v1045 = vpop.xlane.xlu0 %1044
      %1046 = vadd.xlane.f32.xlu0 %v1043
      %v1047 = vpop.xlane.xlu0 %1046
      %v1048 = vcvt.f32.s32 %v1045
      %v1049 = vcvt.f32.s32 %v1047
      %v1050 = vshll.u32 %v1049, 16
      %v1051 = vadd.s32 %v1050, %v1048
      %v1052 = vrot.slane %v1051, 4
      %v1053 = vadd.s32 %v1051, %v1052
      %v1054 = vrot.slane %v1053, 2
      %v1055 = vadd.s32 %v1053, %v1054
      %v1056 = vrot.slane %v1055, 1
      %v1057 = vadd.s32 %v1055, %v1056
      %s1058 = vtos %v1057
      %v1059 = vstv %s1058
      %v1060 = vadd.s32 %v921, %v1059
      %s1061 = sadd.s32 %s43, 6
      %s1062 = sld [smem:[#allocation3 + %s1061]]
      %v1063 = vstv %s1062
      %vm1064 = vcmp.eq.s32.totalorder %v55, %v1063
      %v1065 = vcombine.high %v794, %v794
      %v1067 = vsel %vm1064, 1e+30, %v1065
      %vm1068 = vcmp.eq.s32.totalorder %v33, 6
      %v1069 = vsel %vm1068, 1, 0
      %vm1070 = vcmp.eq.s32.totalorder %v1069, 1
      %v1071 = vsel %vm1070, %v217, 0.0
      %v1072 = vsel %vm1070, %v222, 0.0
      %v1073 = vsel %vm234, %v1071, 0.0
      %1074 = vadd.xlane.f32.xlu0 %v1073
      %v1075 = vpop.xlane.xlu0 %1074
      %v1076 = vsel %vm234, %v1072, 0.0
      %1077 = vadd.xlane.f32.xlu0 %v1076
      %v1078 = vpop.xlane.xlu0 %1077
      %v1079 = vmul.f32 %v1075, -2.0
      %v1080 = vmul.f32 %v1078, -2.0
      %v1081 = vadd.f32 %v1079, %v48
      %v1082 = vadd.f32 %v1080, %v49
      %v1083 = vlaneseq
      %v1084 = vshrl.u32 %v1083, 7
      %v1085 = vsub.s32 6, %v1084
      %v1086 = vrot.slane %v245, %v1085
      %v1087 = vadd.f32 %v1081, %v1086
      %v1088 = vadd.f32 %v1082, %v1086
      %1090 = vset.pattern.permute.xlu0 0
      %1091 = vperm.xlu0 %1090, %v1087
      %v1092 = vpop.permute.xlu0 %1091
      %1095 = vset.pattern.permute.xlu0 0
      %1096 = vperm.xlu0 %1095, %v1088
      %v1097 = vpop.permute.xlu0 %1096
      %v1100 = vlaneseq
      %v1101 = vshrl.u32 %v1100, 7
      %v1102 = vsub.s32 0, %v1101
      %v1103 = vrot.slane %v1067, %v1102
      %v1105 = vsub.f32 %v1092, %v1103
      %v1106 = vsub.f32 %v1097, %v1103
      %vm1107 = vcmp.gt.f32.partialorder %v1105, 0.0
      %vm1108 = vcmp.gt.f32.partialorder %v1106, 0.0
      %vm1109 = vcmp.lt.f32.partialorder %v1105, 1.0
      %vm1110 = vcmp.lt.f32.partialorder %v1106, 1.0
      %vm1111 = vmand %vm1107, %vm1109
      %vm1112 = vmand %vm1108, %vm1110
      %v1113 = vsel %vm1111, %v1105, 0.0
      %v1114 = vsel %vm1112, %v1106, 0.0
      %v1115 = vsel %vm278, %v1113, 0.0
      %1116 = vadd.xlane.f32.xlu0 %v1115
      %v1117 = vpop.xlane.xlu0 %1116
      %v1118 = vsel %vm278, %v1114, 0.0
      %1119 = vadd.xlane.f32.xlu0 %v1118
      %v1120 = vpop.xlane.xlu0 %1119
      %v1121 = vsel %vm1111, 1, 0
      %v1122 = vsel %vm1112, 1, 0
      %v1123 = vsel %vm278, %v1121, 0
      %v1124 = vand.u32 %v1123, 65535
      %v1125 = vshrl.u32 %v1123, 16
      %v1126 = vcvt.s32.f32 %v1124
      %v1127 = vcvt.s32.f32 %v1125
      %1128 = vadd.xlane.f32.xlu0 %v1126
      %v1129 = vpop.xlane.xlu0 %1128
      %1130 = vadd.xlane.f32.xlu0 %v1127
      %v1131 = vpop.xlane.xlu0 %1130
      %v1132 = vcvt.f32.s32 %v1129
      %v1133 = vcvt.f32.s32 %v1131
      %v1134 = vshll.u32 %v1133, 16
      %v1135 = vadd.s32 %v1134, %v1132
      %v1136 = vsel %vm278, %v1122, 0
      %v1137 = vand.u32 %v1136, 65535
      %v1138 = vshrl.u32 %v1136, 16
      %v1139 = vcvt.s32.f32 %v1137
      %v1140 = vcvt.s32.f32 %v1138
      %1141 = vadd.xlane.f32.xlu0 %v1139
      %v1142 = vpop.xlane.xlu0 %1141
      %1143 = vadd.xlane.f32.xlu0 %v1140
      %v1144 = vpop.xlane.xlu0 %1143
      %v1145 = vcvt.f32.s32 %v1142
      %v1146 = vcvt.f32.s32 %v1144
      %v1147 = vshll.u32 %v1146, 16
      %v1148 = vadd.s32 %v1147, %v1145
      %vm1149 = vcmp.eq.s32.totalorder %v53, %v1063
      %vm1150 = vcmp.eq.s32.totalorder %v54, %v1063
      %v1151 = vsel %vm1149, %v1117, 0.0
      %v1152 = vsel %vm1150, %v1120, 0.0
      %v1153 = vsel %vm317, %v1151, 0.0
      %v1154 = vsel %vm317, %v1152, 0.0
      %v1155 = vadd.f32 %v1153, %v1154
      %1156 = vadd.xlane.f32.xlu0 %v1155
      %v1157 = vpop.xlane.xlu0 %1156
      %v1158 = vrot.slane %v1157, 4
      %v1159 = vadd.f32 %v1157, %v1158
      %v1160 = vrot.slane %v1159, 2
      %v1161 = vadd.f32 %v1159, %v1160
      %v1162 = vrot.slane %v1161, 1
      %v1163 = vadd.f32 %v1161, %v1162
      %s1164 = vtos %v1163
      %v1165 = vstv %s1164
      %v1166 = vadd.f32 %v1034, %v1165
      %v1167 = vsel %vm1149, %v1135, 0
      %v1168 = vsel %vm1150, %v1148, 0
      %v1169 = vsel %vm317, %v1167, 0
      %v1170 = vsel %vm317, %v1168, 0
      %v1171 = vadd.s32 %v1169, %v1170
      %v1172 = vand.u32 %v1171, 65535
      %v1173 = vshrl.u32 %v1171, 16
      %v1174 = vcvt.s32.f32 %v1172
      %v1175 = vcvt.s32.f32 %v1173
      %1176 = vadd.xlane.f32.xlu0 %v1174
      %v1177 = vpop.xlane.xlu0 %1176
      %1178 = vadd.xlane.f32.xlu0 %v1175
      %v1179 = vpop.xlane.xlu0 %1178
      %v1180 = vcvt.f32.s32 %v1177
      %v1181 = vcvt.f32.s32 %v1179
      %v1182 = vshll.u32 %v1181, 16
      %v1183 = vadd.s32 %v1182, %v1180
      %v1184 = vrot.slane %v1183, 4
      %v1185 = vadd.s32 %v1183, %v1184
      %v1186 = vrot.slane %v1185, 2
      %v1187 = vadd.s32 %v1185, %v1186
      %v1188 = vrot.slane %v1187, 1
      %v1189 = vadd.s32 %v1187, %v1188
      %s1190 = vtos %v1189
      %v1191 = vstv %s1190
      %v1192 = vadd.s32 %v1060, %v1191
      %s1193 = sadd.s32 %s43, 7
      %s1194 = sld [smem:[#allocation3 + %s1193]]
      %v1195 = vstv %s1194
      %vm1196 = vcmp.eq.s32.totalorder %v55, %v1195
      %v1197 = vcombine.high %v933, %v933
      %v1199 = vsel %vm1196, 1e+30, %v1197
      %vm1200 = vcmp.eq.s32.totalorder %v33, 7
      %v1201 = vsel %vm1200, 1, 0
      %vm1202 = vcmp.eq.s32.totalorder %v1201, 1
      %v1203 = vsel %vm1202, %v217, 0.0
      %v1204 = vsel %vm1202, %v222, 0.0
      %v1205 = vsel %vm234, %v1203, 0.0
      %1206 = vadd.xlane.f32.xlu0 %v1205
      %v1207 = vpop.xlane.xlu0 %1206
      %v1208 = vsel %vm234, %v1204, 0.0
      %1209 = vadd.xlane.f32.xlu0 %v1208
      %v1210 = vpop.xlane.xlu0 %1209
      %v1211 = vmul.f32 %v1207, -2.0
      %v1212 = vmul.f32 %v1210, -2.0
      %v1213 = vadd.f32 %v1211, %v48
      %v1214 = vadd.f32 %v1212, %v49
      %v1215 = vlaneseq
      %v1216 = vshrl.u32 %v1215, 7
      %v1217 = vsub.s32 7, %v1216
      %v1218 = vrot.slane %v245, %v1217
      %v1219 = vadd.f32 %v1213, %v1218
      %v1220 = vadd.f32 %v1214, %v1218
      %1222 = vset.pattern.permute.xlu0 0
      %1223 = vperm.xlu0 %1222, %v1219
      %v1224 = vpop.permute.xlu0 %1223
      %1227 = vset.pattern.permute.xlu0 0
      %1228 = vperm.xlu0 %1227, %v1220
      %v1229 = vpop.permute.xlu0 %1228
      %v1232 = vlaneseq
      %v1233 = vshrl.u32 %v1232, 7
      %v1234 = vsub.s32 0, %v1233
      %v1235 = vrot.slane %v1199, %v1234
      %v1237 = vsub.f32 %v1224, %v1235
      %v1238 = vsub.f32 %v1229, %v1235
      %vm1239 = vcmp.gt.f32.partialorder %v1237, 0.0
      %vm1240 = vcmp.gt.f32.partialorder %v1238, 0.0
      %vm1241 = vcmp.lt.f32.partialorder %v1237, 1.0
      %vm1242 = vcmp.lt.f32.partialorder %v1238, 1.0
      %vm1243 = vmand %vm1239, %vm1241
      %vm1244 = vmand %vm1240, %vm1242
      %v1245 = vsel %vm1243, %v1237, 0.0
      %v1246 = vsel %vm1244, %v1238, 0.0
      %v1247 = vsel %vm278, %v1245, 0.0
      %1248 = vadd.xlane.f32.xlu0 %v1247
      %v1249 = vpop.xlane.xlu0 %1248
      %v1250 = vsel %vm278, %v1246, 0.0
      %1251 = vadd.xlane.f32.xlu0 %v1250
      %v1252 = vpop.xlane.xlu0 %1251
      %v1253 = vsel %vm1243, 1, 0
      %v1254 = vsel %vm1244, 1, 0
      %v1255 = vsel %vm278, %v1253, 0
      %v1256 = vand.u32 %v1255, 65535
      %v1257 = vshrl.u32 %v1255, 16
      %v1258 = vcvt.s32.f32 %v1256
      %v1259 = vcvt.s32.f32 %v1257
      %1260 = vadd.xlane.f32.xlu0 %v1258
      %v1261 = vpop.xlane.xlu0 %1260
      %1262 = vadd.xlane.f32.xlu0 %v1259
      %v1263 = vpop.xlane.xlu0 %1262
      %v1264 = vcvt.f32.s32 %v1261
      %v1265 = vcvt.f32.s32 %v1263
      %v1266 = vshll.u32 %v1265, 16
      %v1267 = vadd.s32 %v1266, %v1264
      %v1268 = vsel %vm278, %v1254, 0
      %v1269 = vand.u32 %v1268, 65535
      %v1270 = vshrl.u32 %v1268, 16
      %v1271 = vcvt.s32.f32 %v1269
      %v1272 = vcvt.s32.f32 %v1270
      %1273 = vadd.xlane.f32.xlu0 %v1271
      %v1274 = vpop.xlane.xlu0 %1273
      %1275 = vadd.xlane.f32.xlu0 %v1272
      %v1276 = vpop.xlane.xlu0 %1275
      %v1277 = vcvt.f32.s32 %v1274
      %v1278 = vcvt.f32.s32 %v1276
      %v1279 = vshll.u32 %v1278, 16
      %v1280 = vadd.s32 %v1279, %v1277
      %vm1281 = vcmp.eq.s32.totalorder %v53, %v1195
      %vm1282 = vcmp.eq.s32.totalorder %v54, %v1195
      %v1283 = vsel %vm1281, %v1249, 0.0
      %v1284 = vsel %vm1282, %v1252, 0.0
      %v1285 = vsel %vm317, %v1283, 0.0
      %v1286 = vsel %vm317, %v1284, 0.0
      %v1287 = vadd.f32 %v1285, %v1286
      %1288 = vadd.xlane.f32.xlu0 %v1287
      %v1289 = vpop.xlane.xlu0 %1288
      %v1290 = vrot.slane %v1289, 4
      %v1291 = vadd.f32 %v1289, %v1290
      %v1292 = vrot.slane %v1291, 2
      %v1293 = vadd.f32 %v1291, %v1292
      %v1294 = vrot.slane %v1293, 1
      %v1295 = vadd.f32 %v1293, %v1294
      %s1296 = vtos %v1295
      %v1297 = vstv %s1296
      %v1298 = vadd.f32 %v1166, %v1297
      %v1299 = vsel %vm1281, %v1267, 0
      %v1300 = vsel %vm1282, %v1280, 0
      %v1301 = vsel %vm317, %v1299, 0
      %v1302 = vsel %vm317, %v1300, 0
      %v1303 = vadd.s32 %v1301, %v1302
      %v1304 = vand.u32 %v1303, 65535
      %v1305 = vshrl.u32 %v1303, 16
      %v1306 = vcvt.s32.f32 %v1304
      %v1307 = vcvt.s32.f32 %v1305
      %1308 = vadd.xlane.f32.xlu0 %v1306
      %v1309 = vpop.xlane.xlu0 %1308
      %1310 = vadd.xlane.f32.xlu0 %v1307
      %v1311 = vpop.xlane.xlu0 %1310
      %v1312 = vcvt.f32.s32 %v1309
      %v1313 = vcvt.f32.s32 %v1311
      %v1314 = vshll.u32 %v1313, 16
      %v1315 = vadd.s32 %v1314, %v1312
      %v1316 = vrot.slane %v1315, 4
      %v1317 = vadd.s32 %v1315, %v1316
      %v1318 = vrot.slane %v1317, 2
      %v1319 = vadd.s32 %v1317, %v1318
      %v1320 = vrot.slane %v1319, 1
      %v1321 = vadd.s32 %v1319, %v1320
      %s1322 = vtos %v1321
      %v1323 = vstv %s1322
      %v1324 = vadd.s32 %v1192, %v1323
    $region26: #{tpu_custom_call.1} parent=1 // loop_footer
      %s39 = sadd.s32 1, %s35
    $region27: #{tpu_custom_call.1} parent=1 // loop_footer_branch
      %34 = sbr.rel target = $region23
    $region28: #{tpu_custom_call.1} parent=1 // loop_exit
      _
    %vm1325 = vcmask 0
    %1326 = vst.msk [vmem:[#allocation4] sm:$0x1] %vm1325, %v40
    %1327 = vst.msk [vmem:[#allocation6] sm:$0x1] %vm1325, %v41
    // Predicated region
    $region29: #{tpu_custom_call.1} parent=1 // pred_check
      _
    $region30: #{tpu_custom_call.1} parent=1 // pred_check_branch
      %1329 = sbr.rel (0) target = $region32
    $region31: #{tpu_custom_call.1} parent=1 // pred_region
      %s1331 = ssub.s32 16, 16
      %1332 = vsyncadd [#allocation5], %s1331
      %s1334 = sshll.u32 [#allocation4], 4
      %s1335 = int_to_ptr.vmem [resolvable:$true] %s1334
      %1337 = dma.vmem_to_hbm [thread:$0]  %s1335, 16, %s6, [#allocation5]
    $region32: #{tpu_custom_call.1} parent=1 // pred_fallthru
      _
    // Predicated region
    $region33: #{tpu_custom_call.1} parent=1 // pred_check
      _
    $region34: #{tpu_custom_call.1} parent=1 // pred_check_branch
      %1339 = sbr.rel (0) target = $region36
    $region35: #{tpu_custom_call.1} parent=1 // pred_region
      %s1341 = ssub.s32 16, 16
      %1342 = vsyncadd [#allocation7], %s1341
      %s1344 = sshll.u32 [#allocation6], 4
      %s1345 = int_to_ptr.vmem [resolvable:$true] %s1344
      %1347 = dma.vmem_to_hbm [thread:$0]  %s1345, 16, %s7, [#allocation7]
    $region36: #{tpu_custom_call.1} parent=1 // pred_fallthru
      _
    // Predicated region
    $region37: #{tpu_custom_call.1} parent=1 // pred_check
      _
    $region38: #{tpu_custom_call.1} parent=1 // pred_check_branch
      %1349 = sbr.rel (0) target = $region40
    $region39: #{tpu_custom_call.1} parent=1 // pred_region
      %1350 = dma.done [#allocation5], 16
    $region40: #{tpu_custom_call.1} parent=1 // pred_fallthru
      _
    // Predicated region
    $region41: #{tpu_custom_call.1} parent=1 // pred_check
      _
    $region42: #{tpu_custom_call.1} parent=1 // pred_check_branch
      %1352 = sbr.rel (0) target = $region44
    $region43: #{tpu_custom_call.1} parent=1 // pred_region
      %1353 = dma.done [#allocation7], 16
    $region44: #{tpu_custom_call.1} parent=1 // pred_fallthru
      _
    %1354 = vsyncpa [#allocation5], 1
    %1355 = vsyncpa [#allocation7], 1

</llo_original>
